<compile_context>
chip_gen: v6e
topology: v6e:2x2x1
jax: 0.10.0
libtpu: 0.0.40
codegen_flags: <defaults>
</compile_context>

<pallas_src>
import math

import jax
import jax.numpy as jnp
from jax import lax
from jax.experimental import pallas as pl
from jax.experimental.pallas import tpu as pltpu

_POOL_KS = (5, 9, 13)          # SPP kernel sizes (implemented as a cascade of 5x5 pools)
_NEG_INF = float("-inf")


def _round_up(x, m):
    return ((x + m - 1) // m) * m


def _make_spp_kernel(Nb, H, Hpad, Cp, WCc, lane_pad):
    """Kernel closure over the static geometry.

    Nb:   images per grid step
    H:    image height (rows)
    Hpad: padded rows per image slab (multiple of 8, >= H + 4)
    Cp:   padded channels per folded-W column
    WCc:  live lanes per row (= W * Cp, multiple of 128)
    lane_pad: -inf lane pad width (>= 2*Cp, multiple of 128)
    """
    Lt = WCc + lane_pad
    rowpad = Hpad - H
    f32 = jnp.float32

    def pool5_lanes(a2):
        # 5-wide shifted max along folded-W lanes (axis 1); log-doubling (3 rolls +
        # 3 maxes).  Exact given a -inf lane pad >= 2*Cp, independent of roll sign.
        pair = jnp.maximum(a2, pltpu.roll(a2, Cp, axis=1))
        quad = jnp.maximum(pair, pltpu.roll(pair, Lt - 2 * Cp, axis=1))
        return jnp.maximum(quad, pltpu.roll(a2, 2 * Cp, axis=1))

    def pool5_rows(slab):
        # 5-tall shifted max along rows (axis 0) of one -inf padded (Hpad, Lt) slab;
        # sublane rolls on the 8-row-aligned scratch (no misaligned sublane slices).
        pair = jnp.maximum(slab, pltpu.roll(slab, 1, axis=0))
        quad = jnp.maximum(pair, pltpu.roll(pair, Hpad - 2, axis=0))
        return jnp.maximum(quad, pltpu.roll(slab, 2, axis=0))

    def kernel(x_ref, w1_ref, b1_ref, w2_ref, b2_ref, o_ref, s_ref):
        # (Re)write only the -inf borders of the persistent padded scratch; the
        # cascade never writes them and the interiors are fully overwritten below.
        # Done unconditionally so each TensorCore's private scratch is valid when
        # the "parallel" grid axis is split across cores.
        s_ref[:, H:Hpad, :] = jnp.full((Nb, rowpad, Lt), _NEG_INF, f32)
        s_ref[:, 0:H, WCc:Lt] = jnp.full((Nb, H, lane_pad), _NEG_INF, f32)

        # cv1: folded 1x1 conv (+BN) + SiLU, batched over Nb images (M = Nb*H rows).
        x = x_ref[...]
        x = x.reshape(Nb * H, x.shape[-1])
        y = jnp.dot(x, w1_ref[...], preferred_element_type=f32) + b1_ref[...]
        y = y * jax.nn.sigmoid(y)                                  # (Nb*H, WCc)

        # cv2: cat([y, p5, p9, p13]) @ w2  ==  sum_i feat_i @ w2_block_i.
        acc = jnp.dot(y, w2_ref[0], preferred_element_type=f32)

        # Seed the scratch interiors with y (leading-dim reshape: layout-free).
        s_ref[:, 0:H, 0:WCc] = y.reshape(Nb, H, WCc)

        # SPPF cascade: 5x5, 9 = 5o5, 13 = 5o5o5 (exact for stride-1 -inf pools).
        for p in range(3):
            a2 = s_ref[...].reshape(Nb * Hpad, Lt)                 # free (Hpad % 8 == 0)
            wmax = pool5_lanes(a2).reshape(Nb, Hpad, Lt)
            pooled_rows = []
            for i in range(Nb):                                    # row-direction per image
                hmax = pool5_rows(wmax[i])
                pooled_rows.append(hmax[0:H, 0:WCc])
                if p < 2:                                          # last level not re-pooled
                    s_ref[i, 0:H, 0:WCc] = hmax[0:H, 0:WCc]
            pooled = (pooled_rows[0] if Nb == 1
                      else jnp.concatenate(pooled_rows, axis=0))   # (Nb*H, WCc)
            acc = acc + jnp.dot(pooled, w2_ref[p + 1], preferred_element_type=f32)

        acc = acc + b2_ref[...]
        out = acc * jax.nn.sigmoid(acc)                            # SiLU
        o_ref[...] = out.reshape(Nb, H, out.shape[-1]).astype(o_ref.dtype)

    return kernel


def _pick_images_per_step(N, H, Hpad, Lt, WC1, WC2, vmem_budget_bytes):
    """Largest divisor of N giving >= 256 matmul rows (when possible) under a VMEM cap."""
    nb = max(1, min(N, -(-256 // H)))            # target >= 256 rows on the MXU M axis
    while N % nb:
        nb -= 1

    def est_bytes(b):
        scratch = b * Hpad * Lt * 4
        blocks = 2 * b * H * (WC1 + WC2) * 4     # double-buffered x / out blocks
        temps = 8 * b * Hpad * Lt * 4            # roll/max temporaries + accumulator
        return scratch + blocks + temps

    while nb > 1 and est_bytes(nb) > vmem_budget_bytes:
        nb -= 1
        while N % nb:
            nb -= 1
    return nb


@jax.jit
def spp_pruned(x_nhwc, w1, b1, w2, b2):
    """SPPPruned forward.

    x_nhwc: (N, H, W, C1) f32.  w1: (C1, C_), w2: (4*C_, C2) BN-folded 1x1 conv
    weights; b1: (C_,), b2: (C2,) folded biases.  Returns (N, H, W, C2).
    All wrapper prep (channel zero-pad, reshape, kron fold) lives inside this jit
    so XLA fuses it with the pallas_call / constant-folds it for static weights.
    """
    N, H, W, C1 = x_nhwc.shape
    C_ = w1.shape[1]
    C2 = w2.shape[1]
    assert w2.shape[0] == 4 * C_

    f32 = jnp.float32
    # Pad channel counts so W*channels is a multiple of 128 (f32 lane tile):
    # lane-dense vregs everywhere and unmasked output stores.
    g = 128 // math.gcd(W, 128)
    pad_c = lambda c: _round_up(c, g)
    C1p, Cp, C2p = pad_c(C1), pad_c(C_), pad_c(C2)
    WC1, WCc, WC2 = W * C1p, W * Cp, W * C2p

    # TODO(synk): for production SPP sizes (C_ >= 128, channels already lane-dense)
    # drop the kron W-fold: use plain (C_in, C_out) weights on an (N*H*W, C) view,
    # bf16 matmul operands, and H-tiling with a 2-row halo per cascaded 5x5 pass.
    # The fold costs W x MXU FLOPs and W^2 weight bytes and only pays off for the
    # tiny pruned channel counts exercised here.
    assert 4 * WCc * WC2 * 4 <= 16 * 1024 * 1024, (
        "kron(I_W, w) folded cv2 weight too large for VMEM; implement the unfolded path")

    # Zero-padded per-channel weights / biases (pad channels contribute exactly 0).
    w1p = jnp.zeros((C1p, Cp), f32).at[:C1, :C_].set(w1.astype(f32))
    b1p = jnp.zeros((Cp,), f32).at[:C_].set(b1.reshape(-1).astype(f32))
    w2p = jnp.zeros((4, Cp, C2p), f32)
    for i in range(4):
        w2p = w2p.at[i, :C_, :C2].set(w2[i * C_:(i + 1) * C_, :].astype(f32))
    b2p = jnp.zeros((C2p,), f32).at[:C2].set(b2.reshape(-1).astype(f32))

    # Fold W into the lane dim; the 1x1 convs become block-diagonal kron(I_W, w)
    # matmuls.  Precomputed once inside the jit (constant-folded for static weights).
    eye_w = jnp.eye(W, dtype=f32)
    w1_big = jnp.kron(eye_w, w1p)                                    # (W*C1p, W*Cp)
    w2_big = jnp.stack([jnp.kron(eye_w, w2p[i]) for i in range(4)])  # (4, WCc, WC2)
    b1_big = jnp.tile(b1p, W)[None, :]                               # (1, WCc)
    b2_big = jnp.tile(b2p, W)[None, :]                               # (1, WC2)

    xp = jnp.zeros((N, H, W, C1p), f32).at[..., :C1].set(x_nhwc.astype(f32))
    xf = xp.reshape(N, H, WC1)                                       # lane-dense input

    # Padded pooling-scratch geometry.
    lane_pad = _round_up(max(128, 2 * Cp), 128)   # -inf lane pad (>= 2*Cp, 128-aligned)
    Lt = WCc + lane_pad
    Hpad = _round_up(H + 4, 8)                    # -inf row pad (>= 4 rows per slab)

    vmem_limit = 48 * 1024 * 1024                 # sized for v7x's 64 MiB/core
    Nb = _pick_images_per_step(N, H, Hpad, Lt, WC1, WC2, vmem_limit // 2)
    grid = (N // Nb,)

    yf = pl.pallas_call(
        _make_spp_kernel(Nb, H, Hpad, Cp, WCc, lane_pad),
        out_shape=jax.ShapeDtypeStruct((N, H, WC2), f32),
        grid_spec=pltpu.PrefetchScalarGridSpec(
            num_scalar_prefetch=0,
            grid=grid,                    # Nb images per step; "parallel" -> megacore split
            in_specs=[
                pl.BlockSpec((Nb, H, WC1), lambda n: (n, 0, 0)),
                # Constant operands: single-buffered (never re-DMAd).
                pl.BlockSpec((WC1, WCc), lambda n: (0, 0),
                             pipeline_mode=pl.Buffered(1)),
                pl.BlockSpec((1, WCc), lambda n: (0, 0),
                             pipeline_mode=pl.Buffered(1)),
                pl.BlockSpec((4, WCc, WC2), lambda n: (0, 0, 0),
                             pipeline_mode=pl.Buffered(1)),
                pl.BlockSpec((1, WC2), lambda n: (0, 0),
                             pipeline_mode=pl.Buffered(1)),
            ],
            out_specs=pl.BlockSpec((Nb, H, WC2), lambda n: (n, 0, 0)),
            scratch_shapes=[pltpu.VMEM((Nb, Hpad, Lt), f32)],   # persistent -inf-padded field
        ),
        compiler_params=pltpu.CompilerParams(
            dimension_semantics=("parallel",),
            vmem_limit_bytes=vmem_limit,
        ),
    )(xf, w1_big, b1_big, w2_big, b2_big)

    # Unfold lanes back to (N, H, W, C2); drop the channel padding.
    return yf.reshape(N, H, W, C2p)[..., :C2]


# ---------------- parameter construction (deterministic, BN folded) ----------------
def _make_folded_conv(key, c_in, c_out, eps=1e-3):
    kw, kg, kb, km, kv = jax.random.split(key, 5)
    w = jax.random.normal(kw, (c_in, c_out), jnp.float32) * 0.1     # 1x1 conv weight
    gamma = 1.0 + 0.1 * jax.random.normal(kg, (c_out,), jnp.float32)
    beta = 0.1 * jax.random.normal(kb, (c_out,), jnp.float32)
    mean = 0.1 * jax.random.normal(km, (c_out,), jnp.float32)
    var = jax.random.uniform(kv, (c_out,), jnp.float32, 0.5, 1.5)
    scale = gamma / jnp.sqrt(var + eps)
    return w * scale[None, :], beta - mean * scale


# ---------------- pure-JAX reference for verification ----------------
def _spp_ref(x_nhwc, w1, b1, w2, b2):
    y1 = jnp.einsum("nhwc,cd->nhwd", x_nhwc, w1) + b1
    y1 = y1 * jax.nn.sigmoid(y1)
    feats = [y1]
    for k in _POOL_KS:
        p = k // 2
        pooled = lax.reduce_window(
            y1, -jnp.inf, lax.max,
            window_dimensions=(1, k, k, 1),
            window_strides=(1, 1, 1, 1),
            padding=((0, 0), (p, p), (p, p), (0, 0)))
        feats.append(pooled)
    cat = jnp.concatenate(feats, axis=-1)
    y2 = jnp.einsum("nhwc,cd->nhwd", cat, w2) + b2
    return y2 * jax.nn.sigmoid(y2)


if __name__ == "__main__":
    # small shapes consistent with SPPPruned(c1=4, c2=8, c_=4), batch=2, spatial=16
    N, C1, H, W = 2, 4, 16, 16
    C_, C2 = 4, 8

    key = jax.random.PRNGKey(0)
    kx, k1, k2 = jax.random.split(key, 3)

    x_nchw = jax.random.normal(kx, (N, C1, H, W), jnp.float32)   # PyTorch NCHW input
    x_nhwc = jnp.transpose(x_nchw, (0, 2, 3, 1))                 # kernel layout NHWC

    w1, b1 = _make_folded_conv(k1, C1, C_)
    w2, b2 = _make_folded_conv(k2, 4 * C_, C2)

    out = spp_pruned(x_nhwc, w1, b1, w2, b2)
    out = jax.block_until_ready(out)

    ref = _spp_ref(x_nhwc, w1, b1.reshape(1, -1), w2, b2.reshape(1, -1))
    assert out.shape == (N, H, W, C2)
    assert jnp.allclose(out, ref, atol=1e-4, rtol=1e-4), "mismatch vs JAX reference"

    print("KERNEL_OK")
</pallas_src>

<mosaic_0001>
module attributes {stable_mosaic.version = 11 : i64} {
  func.func @kernel(%arg0: i32, %arg1: memref<2x16x128xf32, #tpu.memory_space<vmem>>, %arg2: memref<128x128xf32, #tpu.memory_space<vmem>>, %arg3: memref<1x128xf32, #tpu.memory_space<vmem>>, %arg4: memref<4x128x128xf32, #tpu.memory_space<vmem>>, %arg5: memref<1x128xf32, #tpu.memory_space<vmem>>, %arg6: memref<2x16x128xf32, #tpu.memory_space<vmem>>, %arg7: memref<2x24x256xf32, #tpu.memory_space<vmem>>) attributes {dimension_semantics = [#tpu.dimension_semantics<parallel>], iteration_bounds = array<i64: 1>, scalar_prefetch = 0 : i64, scratch_operands = 1 : i64, tpu.core_type = #tpu.core_type<tc>, window_params = [{transform_indices = @transform_0, window_bounds = array<i64: 2, 16, 128>}, {pipeline_mode = #tpu.pipeline_mode<synchronous>, transform_indices = @transform_1, window_bounds = array<i64: 128, 128>}, {pipeline_mode = #tpu.pipeline_mode<synchronous>, transform_indices = @transform_2, window_bounds = array<i64: 1, 128>}, {pipeline_mode = #tpu.pipeline_mode<synchronous>, transform_indices = @transform_3, window_bounds = array<i64: 4, 128, 128>}, {pipeline_mode = #tpu.pipeline_mode<synchronous>, transform_indices = @transform_4, window_bounds = array<i64: 1, 128>}, {transform_indices = @transform_5, window_bounds = array<i64: 2, 16, 128>}]} {
    %cst = arith.constant 0xFF800000 : f32
    %0 = vector.broadcast %cst : f32 to vector<2x8x256xf32>
    %c0 = arith.constant 0 : index
    %c16 = arith.constant 16 : index
    %c0_0 = arith.constant 0 : index
    %1 = vector.load %arg7[%c0, %c16, %c0_0] : memref<2x24x256xf32, #tpu.memory_space<vmem>>, vector<2x8x256xf32>
    tpu.vector_store %arg7[%c0, %c16, %c0_0], %0 {strides = array<i32>} : memref<2x24x256xf32, #tpu.memory_space<vmem>>, vector<2x8x256xf32>,
    %cst_1 = arith.constant 0xFF800000 : f32
    %2 = vector.broadcast %cst_1 : f32 to vector<2x16x128xf32>
    %c0_2 = arith.constant 0 : index
    %c0_3 = arith.constant 0 : index
    %c128 = arith.constant 128 : index
    %3 = vector.load %arg7[%c0_2, %c0_3, %c128] : memref<2x24x256xf32, #tpu.memory_space<vmem>>, vector<2x16x128xf32>
    tpu.vector_store %arg7[%c0_2, %c0_3, %c128], %2 {strides = array<i32>} : memref<2x24x256xf32, #tpu.memory_space<vmem>>, vector<2x16x128xf32>,
    %c0_4 = arith.constant 0 : index
    %c0_5 = arith.constant 0 : index
    %c0_6 = arith.constant 0 : index
    %4 = vector.load %arg1[%c0_4, %c0_5, %c0_6] : memref<2x16x128xf32, #tpu.memory_space<vmem>>, vector<2x16x128xf32>
    %5 = vector.shape_cast %4 : vector<2x16x128xf32> to vector<32x128xf32>
    %c0_7 = arith.constant 0 : index
    %c0_8 = arith.constant 0 : index
    %6 = vector.load %arg2[%c0_7, %c0_8] : memref<128x128xf32, #tpu.memory_space<vmem>>, vector<128x128xf32>
    %cst_9 = arith.constant dense<0.000000e+00> : vector<32x128xf32>
    %7 = tpu.matmul %5, %6, %cst_9 {dimension_numbers = #tpu.dot_dimension_numbers<[1], [0], [0], [1], [0, 0, 1, 1], [], []>} : vector<32x128xf32>, vector<128x128xf32>, vector<32x128xf32> -> vector<32x128xf32>
    %c0_10 = arith.constant 0 : index
    %c0_11 = arith.constant 0 : index
    %8 = vector.load %arg3[%c0_10, %c0_11] : memref<1x128xf32, #tpu.memory_space<vmem>>, vector<1x128xf32>
    %9 = vector.broadcast %8 : vector<1x128xf32> to vector<32x128xf32>
    %10 = arith.addf %7, %9 : vector<32x128xf32>
    %11 = arith.negf %10 : vector<32x128xf32>
    %12 = math.exp %11 : vector<32x128xf32>
    %cst_12 = arith.constant 1.000000e+00 : f32
    %13 = vector.broadcast %cst_12 : f32 to vector<32x128xf32>
    %14 = arith.addf %13, %12 : vector<32x128xf32>
    %15 = arith.divf %13, %14 : vector<32x128xf32>
    %16 = arith.mulf %10, %15 : vector<32x128xf32>
    %c0_13 = arith.constant 0 : index
    %c0_14 = arith.constant 0 : index
    %c0_15 = arith.constant 0 : index
    %17 = vector.load %arg4[%c0_13, %c0_14, %c0_15] : memref<4x128x128xf32, #tpu.memory_space<vmem>>, vector<1x128x128xf32>
    %18 = vector.shape_cast %17 : vector<1x128x128xf32> to vector<128x128xf32>
    %cst_16 = arith.constant dense<0.000000e+00> : vector<32x128xf32>
    %19 = tpu.matmul %16, %18, %cst_16 {dimension_numbers = #tpu.dot_dimension_numbers<[1], [0], [0], [1], [0, 0, 1, 1], [], []>} : vector<32x128xf32>, vector<128x128xf32>, vector<32x128xf32> -> vector<32x128xf32>
    %20 = vector.shape_cast %16 : vector<32x128xf32> to vector<2x16x128xf32>
    %c0_17 = arith.constant 0 : index
    %c0_18 = arith.constant 0 : index
    %c0_19 = arith.constant 0 : index
    %21 = vector.load %arg7[%c0_17, %c0_18, %c0_19] : memref<2x24x256xf32, #tpu.memory_space<vmem>>, vector<2x16x128xf32>
    tpu.vector_store %arg7[%c0_17, %c0_18, %c0_19], %20 {strides = array<i32>} : memref<2x24x256xf32, #tpu.memory_space<vmem>>, vector<2x16x128xf32>,
    %c0_20 = arith.constant 0 : index
    %c0_21 = arith.constant 0 : index
    %c0_22 = arith.constant 0 : index
    %22 = vector.load %arg7[%c0_20, %c0_21, %c0_22] : memref<2x24x256xf32, #tpu.memory_space<vmem>>, vector<2x24x256xf32>
    %23 = vector.shape_cast %22 : vector<2x24x256xf32> to vector<48x256xf32>
    %c8_i32 = arith.constant 8 : i32
    %24 = tpu.dynamic_rotate %23 by %c8_i32 dim 1 : vector<48x256xf32>, i32 -> vector<48x256xf32>
    %25 = arith.maximumf %23, %24 : vector<48x256xf32>
    %c240_i32 = arith.constant 240 : i32
    %26 = tpu.dynamic_rotate %25 by %c240_i32 dim 1 : vector<48x256xf32>, i32 -> vector<48x256xf32>
    %27 = arith.maximumf %25, %26 : vector<48x256xf32>
    %c16_i32 = arith.constant 16 : i32
    %28 = tpu.dynamic_rotate %23 by %c16_i32 dim 1 : vector<48x256xf32>, i32 -> vector<48x256xf32>
    %29 = arith.maximumf %27, %28 : vector<48x256xf32>
    %30 = vector.shape_cast %29 : vector<48x256xf32> to vector<2x24x256xf32>
    %31 = vector.extract_strided_slice %30 {offsets = [0, 0, 0], sizes = [1, 24, 256], strides = [1, 1, 1]} : vector<2x24x256xf32> to vector<1x24x256xf32>
    %32 = vector.shape_cast %31 : vector<1x24x256xf32> to vector<24x256xf32>
    %c1_i32 = arith.constant 1 : i32
    %33 = tpu.dynamic_rotate %32 by %c1_i32 dim 0 : vector<24x256xf32>, i32 -> vector<24x256xf32>
    %34 = arith.maximumf %32, %33 : vector<24x256xf32>
    %c22_i32 = arith.constant 22 : i32
    %35 = tpu.dynamic_rotate %34 by %c22_i32 dim 0 : vector<24x256xf32>, i32 -> vector<24x256xf32>
    %36 = arith.maximumf %34, %35 : vector<24x256xf32>
    %c2_i32 = arith.constant 2 : i32
    %37 = tpu.dynamic_rotate %32 by %c2_i32 dim 0 : vector<24x256xf32>, i32 -> vector<24x256xf32>
    %38 = arith.maximumf %36, %37 : vector<24x256xf32>
    %39 = vector.extract_strided_slice %38 {offsets = [0, 0], sizes = [16, 128], strides = [1, 1]} : vector<24x256xf32> to vector<16x128xf32>
    %40 = vector.extract_strided_slice %38 {offsets = [0, 0], sizes = [16, 128], strides = [1, 1]} : vector<24x256xf32> to vector<16x128xf32>
    %c0_23 = arith.constant 0 : index
    %c0_24 = arith.constant 0 : index
    %c0_25 = arith.constant 0 : index
    %41 = vector.load %arg7[%c0_23, %c0_24, %c0_25] : memref<2x24x256xf32, #tpu.memory_space<vmem>>, vector<1x16x128xf32>
    %42 = vector.shape_cast %41 : vector<1x16x128xf32> to vector<16x128xf32>
    %43 = vector.shape_cast %40 : vector<16x128xf32> to vector<1x16x128xf32>
    tpu.vector_store %arg7[%c0_23, %c0_24, %c0_25], %43 {strides = array<i32>} : memref<2x24x256xf32, #tpu.memory_space<vmem>>, vector<1x16x128xf32>,
    %44 = vector.extract_strided_slice %30 {offsets = [1, 0, 0], sizes = [1, 24, 256], strides = [1, 1, 1]} : vector<2x24x256xf32> to vector<1x24x256xf32>
    %45 = vector.shape_cast %44 : vector<1x24x256xf32> to vector<24x256xf32>
    %c1_i32_26 = arith.constant 1 : i32
    %46 = tpu.dynamic_rotate %45 by %c1_i32_26 dim 0 : vector<24x256xf32>, i32 -> vector<24x256xf32>
    %47 = arith.maximumf %45, %46 : vector<24x256xf32>
    %c22_i32_27 = arith.constant 22 : i32
    %48 = tpu.dynamic_rotate %47 by %c22_i32_27 dim 0 : vector<24x256xf32>, i32 -> vector<24x256xf32>
    %49 = arith.maximumf %47, %48 : vector<24x256xf32>
    %c2_i32_28 = arith.constant 2 : i32
    %50 = tpu.dynamic_rotate %45 by %c2_i32_28 dim 0 : vector<24x256xf32>, i32 -> vector<24x256xf32>
    %51 = arith.maximumf %49, %50 : vector<24x256xf32>
    %52 = vector.extract_strided_slice %51 {offsets = [0, 0], sizes = [16, 128], strides = [1, 1]} : vector<24x256xf32> to vector<16x128xf32>
    %53 = vector.extract_strided_slice %51 {offsets = [0, 0], sizes = [16, 128], strides = [1, 1]} : vector<24x256xf32> to vector<16x128xf32>
    %c1 = arith.constant 1 : index
    %c0_29 = arith.constant 0 : index
    %c0_30 = arith.constant 0 : index
    %54 = vector.load %arg7[%c1, %c0_29, %c0_30] : memref<2x24x256xf32, #tpu.memory_space<vmem>>, vector<1x16x128xf32>
    %55 = vector.shape_cast %54 : vector<1x16x128xf32> to vector<16x128xf32>
    %56 = vector.shape_cast %53 : vector<16x128xf32> to vector<1x16x128xf32>
    tpu.vector_store %arg7[%c1, %c0_29, %c0_30], %56 {strides = array<i32>} : memref<2x24x256xf32, #tpu.memory_space<vmem>>, vector<1x16x128xf32>,
    %57 = tpu.concatenate %39, %52 in 0 : vector<16x128xf32>, vector<16x128xf32> -> vector<32x128xf32>
    %c1_31 = arith.constant 1 : index
    %c0_32 = arith.constant 0 : index
    %c0_33 = arith.constant 0 : index
    %58 = vector.load %arg4[%c1_31, %c0_32, %c0_33] : memref<4x128x128xf32, #tpu.memory_space<vmem>>, vector<1x128x128xf32>
    %59 = vector.shape_cast %58 : vector<1x128x128xf32> to vector<128x128xf32>
    %cst_34 = arith.constant dense<0.000000e+00> : vector<32x128xf32>
    %60 = tpu.matmul %57, %59, %cst_34 {dimension_numbers = #tpu.dot_dimension_numbers<[1], [0], [0], [1], [0, 0, 1, 1], [], []>} : vector<32x128xf32>, vector<128x128xf32>, vector<32x128xf32> -> vector<32x128xf32>
    %61 = arith.addf %19, %60 : vector<32x128xf32>
    %c0_35 = arith.constant 0 : index
    %c0_36 = arith.constant 0 : index
    %c0_37 = arith.constant 0 : index
    %62 = vector.load %arg7[%c0_35, %c0_36, %c0_37] : memref<2x24x256xf32, #tpu.memory_space<vmem>>, vector<2x24x256xf32>
    %63 = vector.shape_cast %62 : vector<2x24x256xf32> to vector<48x256xf32>
    %c8_i32_38 = arith.constant 8 : i32
    %64 = tpu.dynamic_rotate %63 by %c8_i32_38 dim 1 : vector<48x256xf32>, i32 -> vector<48x256xf32>
    %65 = arith.maximumf %63, %64 : vector<48x256xf32>
    %c240_i32_39 = arith.constant 240 : i32
    %66 = tpu.dynamic_rotate %65 by %c240_i32_39 dim 1 : vector<48x256xf32>, i32 -> vector<48x256xf32>
    %67 = arith.maximumf %65, %66 : vector<48x256xf32>
    %c16_i32_40 = arith.constant 16 : i32
    %68 = tpu.dynamic_rotate %63 by %c16_i32_40 dim 1 : vector<48x256xf32>, i32 -> vector<48x256xf32>
    %69 = arith.maximumf %67, %68 : vector<48x256xf32>
    %70 = vector.shape_cast %69 : vector<48x256xf32> to vector<2x24x256xf32>
    %71 = vector.extract_strided_slice %70 {offsets = [0, 0, 0], sizes = [1, 24, 256], strides = [1, 1, 1]} : vector<2x24x256xf32> to vector<1x24x256xf32>
    %72 = vector.shape_cast %71 : vector<1x24x256xf32> to vector<24x256xf32>
    %c1_i32_41 = arith.constant 1 : i32
    %73 = tpu.dynamic_rotate %72 by %c1_i32_41 dim 0 : vector<24x256xf32>, i32 -> vector<24x256xf32>
    %74 = arith.maximumf %72, %73 : vector<24x256xf32>
    %c22_i32_42 = arith.constant 22 : i32
    %75 = tpu.dynamic_rotate %74 by %c22_i32_42 dim 0 : vector<24x256xf32>, i32 -> vector<24x256xf32>
    %76 = arith.maximumf %74, %75 : vector<24x256xf32>
    %c2_i32_43 = arith.constant 2 : i32
    %77 = tpu.dynamic_rotate %72 by %c2_i32_43 dim 0 : vector<24x256xf32>, i32 -> vector<24x256xf32>
    %78 = arith.maximumf %76, %77 : vector<24x256xf32>
    %79 = vector.extract_strided_slice %78 {offsets = [0, 0], sizes = [16, 128], strides = [1, 1]} : vector<24x256xf32> to vector<16x128xf32>
    %80 = vector.extract_strided_slice %78 {offsets = [0, 0], sizes = [16, 128], strides = [1, 1]} : vector<24x256xf32> to vector<16x128xf32>
    %c0_44 = arith.constant 0 : index
    %c0_45 = arith.constant 0 : index
    %c0_46 = arith.constant 0 : index
    %81 = vector.load %arg7[%c0_44, %c0_45, %c0_46] : memref<2x24x256xf32, #tpu.memory_space<vmem>>, vector<1x16x128xf32>
    %82 = vector.shape_cast %81 : vector<1x16x128xf32> to vector<16x128xf32>
    %83 = vector.shape_cast %80 : vector<16x128xf32> to vector<1x16x128xf32>
    tpu.vector_store %arg7[%c0_44, %c0_45, %c0_46], %83 {strides = array<i32>} : memref<2x24x256xf32, #tpu.memory_space<vmem>>, vector<1x16x128xf32>,
    %84 = vector.extract_strided_slice %70 {offsets = [1, 0, 0], sizes = [1, 24, 256], strides = [1, 1, 1]} : vector<2x24x256xf32> to vector<1x24x256xf32>
    %85 = vector.shape_cast %84 : vector<1x24x256xf32> to vector<24x256xf32>
    %c1_i32_47 = arith.constant 1 : i32
    %86 = tpu.dynamic_rotate %85 by %c1_i32_47 dim 0 : vector<24x256xf32>, i32 -> vector<24x256xf32>
    %87 = arith.maximumf %85, %86 : vector<24x256xf32>
    %c22_i32_48 = arith.constant 22 : i32
    %88 = tpu.dynamic_rotate %87 by %c22_i32_48 dim 0 : vector<24x256xf32>, i32 -> vector<24x256xf32>
    %89 = arith.maximumf %87, %88 : vector<24x256xf32>
    %c2_i32_49 = arith.constant 2 : i32
    %90 = tpu.dynamic_rotate %85 by %c2_i32_49 dim 0 : vector<24x256xf32>, i32 -> vector<24x256xf32>
    %91 = arith.maximumf %89, %90 : vector<24x256xf32>
    %92 = vector.extract_strided_slice %91 {offsets = [0, 0], sizes = [16, 128], strides = [1, 1]} : vector<24x256xf32> to vector<16x128xf32>
    %93 = vector.extract_strided_slice %91 {offsets = [0, 0], sizes = [16, 128], strides = [1, 1]} : vector<24x256xf32> to vector<16x128xf32>
    %c1_50 = arith.constant 1 : index
    %c0_51 = arith.constant 0 : index
    %c0_52 = arith.constant 0 : index
    %94 = vector.load %arg7[%c1_50, %c0_51, %c0_52] : memref<2x24x256xf32, #tpu.memory_space<vmem>>, vector<1x16x128xf32>
    %95 = vector.shape_cast %94 : vector<1x16x128xf32> to vector<16x128xf32>
    %96 = vector.shape_cast %93 : vector<16x128xf32> to vector<1x16x128xf32>
    tpu.vector_store %arg7[%c1_50, %c0_51, %c0_52], %96 {strides = array<i32>} : memref<2x24x256xf32, #tpu.memory_space<vmem>>, vector<1x16x128xf32>,
    %97 = tpu.concatenate %79, %92 in 0 : vector<16x128xf32>, vector<16x128xf32> -> vector<32x128xf32>
    %c2 = arith.constant 2 : index
    %c0_53 = arith.constant 0 : index
    %c0_54 = arith.constant 0 : index
    %98 = vector.load %arg4[%c2, %c0_53, %c0_54] : memref<4x128x128xf32, #tpu.memory_space<vmem>>, vector<1x128x128xf32>
    %99 = vector.shape_cast %98 : vector<1x128x128xf32> to vector<128x128xf32>
    %cst_55 = arith.constant dense<0.000000e+00> : vector<32x128xf32>
    %100 = tpu.matmul %97, %99, %cst_55 {dimension_numbers = #tpu.dot_dimension_numbers<[1], [0], [0], [1], [0, 0, 1, 1], [], []>} : vector<32x128xf32>, vector<128x128xf32>, vector<32x128xf32> -> vector<32x128xf32>
    %101 = arith.addf %61, %100 : vector<32x128xf32>
    %c0_56 = arith.constant 0 : index
    %c0_57 = arith.constant 0 : index
    %c0_58 = arith.constant 0 : index
    %102 = vector.load %arg7[%c0_56, %c0_57, %c0_58] : memref<2x24x256xf32, #tpu.memory_space<vmem>>, vector<2x24x256xf32>
    %103 = vector.shape_cast %102 : vector<2x24x256xf32> to vector<48x256xf32>
    %c8_i32_59 = arith.constant 8 : i32
    %104 = tpu.dynamic_rotate %103 by %c8_i32_59 dim 1 : vector<48x256xf32>, i32 -> vector<48x256xf32>
    %105 = arith.maximumf %103, %104 : vector<48x256xf32>
    %c240_i32_60 = arith.constant 240 : i32
    %106 = tpu.dynamic_rotate %105 by %c240_i32_60 dim 1 : vector<48x256xf32>, i32 -> vector<48x256xf32>
    %107 = arith.maximumf %105, %106 : vector<48x256xf32>
    %c16_i32_61 = arith.constant 16 : i32
    %108 = tpu.dynamic_rotate %103 by %c16_i32_61 dim 1 : vector<48x256xf32>, i32 -> vector<48x256xf32>
    %109 = arith.maximumf %107, %108 : vector<48x256xf32>
    %110 = vector.shape_cast %109 : vector<48x256xf32> to vector<2x24x256xf32>
    %111 = vector.extract_strided_slice %110 {offsets = [0, 0, 0], sizes = [1, 24, 256], strides = [1, 1, 1]} : vector<2x24x256xf32> to vector<1x24x256xf32>
    %112 = vector.shape_cast %111 : vector<1x24x256xf32> to vector<24x256xf32>
    %c1_i32_62 = arith.constant 1 : i32
    %113 = tpu.dynamic_rotate %112 by %c1_i32_62 dim 0 : vector<24x256xf32>, i32 -> vector<24x256xf32>
    %114 = arith.maximumf %112, %113 : vector<24x256xf32>
    %c22_i32_63 = arith.constant 22 : i32
    %115 = tpu.dynamic_rotate %114 by %c22_i32_63 dim 0 : vector<24x256xf32>, i32 -> vector<24x256xf32>
    %116 = arith.maximumf %114, %115 : vector<24x256xf32>
    %c2_i32_64 = arith.constant 2 : i32
    %117 = tpu.dynamic_rotate %112 by %c2_i32_64 dim 0 : vector<24x256xf32>, i32 -> vector<24x256xf32>
    %118 = arith.maximumf %116, %117 : vector<24x256xf32>
    %119 = vector.extract_strided_slice %118 {offsets = [0, 0], sizes = [16, 128], strides = [1, 1]} : vector<24x256xf32> to vector<16x128xf32>
    %120 = vector.extract_strided_slice %110 {offsets = [1, 0, 0], sizes = [1, 24, 256], strides = [1, 1, 1]} : vector<2x24x256xf32> to vector<1x24x256xf32>
    %121 = vector.shape_cast %120 : vector<1x24x256xf32> to vector<24x256xf32>
    %c1_i32_65 = arith.constant 1 : i32
    %122 = tpu.dynamic_rotate %121 by %c1_i32_65 dim 0 : vector<24x256xf32>, i32 -> vector<24x256xf32>
    %123 = arith.maximumf %121, %122 : vector<24x256xf32>
    %c22_i32_66 = arith.constant 22 : i32
    %124 = tpu.dynamic_rotate %123 by %c22_i32_66 dim 0 : vector<24x256xf32>, i32 -> vector<24x256xf32>
    %125 = arith.maximumf %123, %124 : vector<24x256xf32>
    %c2_i32_67 = arith.constant 2 : i32
    %126 = tpu.dynamic_rotate %121 by %c2_i32_67 dim 0 : vector<24x256xf32>, i32 -> vector<24x256xf32>
    %127 = arith.maximumf %125, %126 : vector<24x256xf32>
    %128 = vector.extract_strided_slice %127 {offsets = [0, 0], sizes = [16, 128], strides = [1, 1]} : vector<24x256xf32> to vector<16x128xf32>
    %129 = tpu.concatenate %119, %128 in 0 : vector<16x128xf32>, vector<16x128xf32> -> vector<32x128xf32>
    %c3 = arith.constant 3 : index
    %c0_68 = arith.constant 0 : index
    %c0_69 = arith.constant 0 : index
    %130 = vector.load %arg4[%c3, %c0_68, %c0_69] : memref<4x128x128xf32, #tpu.memory_space<vmem>>, vector<1x128x128xf32>
    %131 = vector.shape_cast %130 : vector<1x128x128xf32> to vector<128x128xf32>
    %cst_70 = arith.constant dense<0.000000e+00> : vector<32x128xf32>
    %132 = tpu.matmul %129, %131, %cst_70 {dimension_numbers = #tpu.dot_dimension_numbers<[1], [0], [0], [1], [0, 0, 1, 1], [], []>} : vector<32x128xf32>, vector<128x128xf32>, vector<32x128xf32> -> vector<32x128xf32>
    %133 = arith.addf %101, %132 : vector<32x128xf32>
    %c0_71 = arith.constant 0 : index
    %c0_72 = arith.constant 0 : index
    %134 = vector.load %arg5[%c0_71, %c0_72] : memref<1x128xf32, #tpu.memory_space<vmem>>, vector<1x128xf32>
    %135 = vector.broadcast %134 : vector<1x128xf32> to vector<32x128xf32>
    %136 = arith.addf %133, %135 : vector<32x128xf32>
    %137 = arith.negf %136 : vector<32x128xf32>
    %138 = math.exp %137 : vector<32x128xf32>
    %cst_73 = arith.constant 1.000000e+00 : f32
    %139 = vector.broadcast %cst_73 : f32 to vector<32x128xf32>
    %140 = arith.addf %139, %138 : vector<32x128xf32>
    %141 = arith.divf %139, %140 : vector<32x128xf32>
    %142 = arith.mulf %136, %141 : vector<32x128xf32>
    %143 = vector.shape_cast %142 : vector<32x128xf32> to vector<2x16x128xf32>
    %c0_74 = arith.constant 0 : index
    %c0_75 = arith.constant 0 : index
    %c0_76 = arith.constant 0 : index
    %144 = vector.load %arg6[%c0_74, %c0_75, %c0_76] : memref<2x16x128xf32, #tpu.memory_space<vmem>>, vector<2x16x128xf32>
    tpu.vector_store %arg6[%c0_74, %c0_75, %c0_76], %143 {strides = array<i32>} : memref<2x16x128xf32, #tpu.memory_space<vmem>>, vector<2x16x128xf32>,
    return
  }
  func.func @transform_0(%arg0: i32) -> (i32, i32, i32) {
    %c0_i32 = arith.constant 0 : i32
    %c0_i32_0 = arith.constant 0 : i32
    %c0_i32_1 = arith.constant 0 : i32
    return %arg0, %c0_i32, %c0_i32_0 : i32, i32, i32
  }
  func.func @transform_1(%arg0: i32) -> (i32, i32) {
    %c0_i32 = arith.constant 0 : i32
    %c0_i32_0 = arith.constant 0 : i32
    %c0_i32_1 = arith.constant 0 : i32
    return %c0_i32, %c0_i32_0 : i32, i32
  }
  func.func @transform_2(%arg0: i32) -> (i32, i32) {
    %c0_i32 = arith.constant 0 : i32
    %c0_i32_0 = arith.constant 0 : i32
    %c0_i32_1 = arith.constant 0 : i32
    return %c0_i32, %c0_i32_0 : i32, i32
  }
  func.func @transform_3(%arg0: i32) -> (i32, i32, i32) {
    %c0_i32 = arith.constant 0 : i32
    %c0_i32_0 = arith.constant 0 : i32
    %c0_i32_1 = arith.constant 0 : i32
    %c0_i32_2 = arith.constant 0 : i32
    return %c0_i32, %c0_i32_0, %c0_i32_1 : i32, i32, i32
  }
  func.func @transform_4(%arg0: i32) -> (i32, i32) {
    %c0_i32 = arith.constant 0 : i32
    %c0_i32_0 = arith.constant 0 : i32
    %c0_i32_1 = arith.constant 0 : i32
    return %c0_i32, %c0_i32_0 : i32, i32
  }
  func.func @transform_5(%arg0: i32) -> (i32, i32, i32) {
    %c0_i32 = arith.constant 0 : i32
    %c0_i32_0 = arith.constant 0 : i32
    %c0_i32_1 = arith.constant 0 : i32
    return %arg0, %c0_i32, %c0_i32_0 : i32, i32, i32
  }
}

</mosaic_0001>

<llo_original>
// kernel: tile.13
$region0: #{tile.13}
  #allocation0 [shape = 's32[1]{0}', space=sflag, size = 0x4, scoped, tag = 'scoped memory for tile.13']
  %s0 = inlined_call_operand.vmem [shape: f32[8], index: 0, kind: input, shape index: {}]
  %s1 = inlined_call_operand.vmem [shape: f32[16,8], index: 1, kind: output, shape index: {}]
  // Predicated region
  $region2: #{tile.13} parent=0 // pred_check
    _
  $region3: #{tile.13} parent=0 // pred_check_branch
    %3 = sbr.rel (0) target = $region5
  $region4: #{tile.13} parent=0 // pred_region
    _
  $region5: #{tile.13} parent=0 // pred_fallthru
    _
  %v4 = vld [vmem:[%s0] ss:$0 sm:$0xff]
  %5 = vst [vmem:[%s1] sm:$0xff] %v4
  %s6 = scalar_lea.vmem %s1, 8
  %7 = vst [vmem:[%s6] sm:$0xff] %v4

// kernel: tile.14
$region0: #{tile.14}
  %s0 = inlined_call_operand.vmem [shape: f32[16,8], index: 0, kind: input, shape index: {}]
  %s1 = inlined_call_operand.vmem [shape: f32[1,128], index: 1, kind: output, shape index: {}]
  $region1: #{tile.14} parent=0
    #allocation0 [shape = 'u8[4096]{0}', space=vmem, size = 0x1000, scoped, tag = 'scoped mem for output reshape']
    %v2 = vld [vmem:[%s0] sm:$0x1]
    %vm3 = vcmask 64512
    %4 = vst.msk [vmem:[#allocation0] sm:$0x1] %vm3, %v2
    %s5 = scalar_lea.vmem %s0, 15
    %v6 = vld [vmem:[%s5] sm:$0x1]
    %7 = vrot.lane.b32.xlu0 %v6, 120
    %v8 = vpop.permute.xlu0 %7
    %vm9 = vcmask 1048512
    %10 = vst.msk [vmem:[#allocation0] sm:$0x1] %vm9, %v8
    %s11 = scalar_lea.vmem %s0, 14
    %v12 = vld [vmem:[%s11] sm:$0x1]
    %13 = vrot.lane.b32.xlu0 %v12, 112
    %v14 = vpop.permute.xlu0 %13
    %vm15 = vcmask 982912
    %16 = vst.msk [vmem:[#allocation0] sm:$0x1] %vm15, %v14
    %s17 = scalar_lea.vmem %s0, 13
    %v18 = vld [vmem:[%s17] sm:$0x1]
    %19 = vrot.lane.b32.xlu0 %v18, 104
    %v20 = vpop.permute.xlu0 %19
    %vm21 = vcmask 917312
    %22 = vst.msk [vmem:[#allocation0] sm:$0x1] %vm21, %v20
    %s23 = scalar_lea.vmem %s0, 12
    %v24 = vld [vmem:[%s23] sm:$0x1]
    %25 = vrot.lane.b32.xlu0 %v24, 96
    %v26 = vpop.permute.xlu0 %25
    %vm27 = vcmask 851712
    %28 = vst.msk [vmem:[#allocation0] sm:$0x1] %vm27, %v26
    %s29 = scalar_lea.vmem %s0, 11
    %v30 = vld [vmem:[%s29] sm:$0x1]
    %31 = vrot.lane.b32.xlu0 %v30, 88
    %v32 = vpop.permute.xlu0 %31
    %vm33 = vcmask 786112
    %34 = vst.msk [vmem:[#allocation0] sm:$0x1] %vm33, %v32
    %s35 = scalar_lea.vmem %s0, 10
    %v36 = vld [vmem:[%s35] sm:$0x1]
    %37 = vrot.lane.b32.xlu0 %v36, 80
    %v38 = vpop.permute.xlu0 %37
    %vm39 = vcmask 720512
    %40 = vst.msk [vmem:[#allocation0] sm:$0x1] %vm39, %v38
    %s41 = scalar_lea.vmem %s0, 9
    %v42 = vld [vmem:[%s41] sm:$0x1]
    %43 = vrot.lane.b32.xlu0 %v42, 72
    %v44 = vpop.permute.xlu0 %43
    %vm45 = vcmask 654912
    %46 = vst.msk [vmem:[#allocation0] sm:$0x1] %vm45, %v44
    %s47 = scalar_lea.vmem %s0, 8
    %v48 = vld [vmem:[%s47] sm:$0x1]
    %49 = vrot.lane.b32.xlu0 %v48, 64
    %v50 = vpop.permute.xlu0 %49
    %vm51 = vcmask 589312
    %52 = vst.msk [vmem:[#allocation0] sm:$0x1] %vm51, %v50
    %s53 = scalar_lea.vmem %s0, 7
    %v54 = vld [vmem:[%s53] sm:$0x1]
    %55 = vrot.lane.b32.xlu0 %v54, 56
    %v56 = vpop.permute.xlu0 %55
    %vm57 = vcmask 523712
    %58 = vst.msk [vmem:[#allocation0] sm:$0x1] %vm57, %v56
    %s59 = scalar_lea.vmem %s0, 6
    %v60 = vld [vmem:[%s59] sm:$0x1]
    %61 = vrot.lane.b32.xlu0 %v60, 48
    %v62 = vpop.permute.xlu0 %61
    %vm63 = vcmask 458112
    %64 = vst.msk [vmem:[#allocation0] sm:$0x1] %vm63, %v62
    %s65 = scalar_lea.vmem %s0, 5
    %v66 = vld [vmem:[%s65] sm:$0x1]
    %67 = vrot.lane.b32.xlu0 %v66, 40
    %v68 = vpop.permute.xlu0 %67
    %vm69 = vcmask 392512
    %70 = vst.msk [vmem:[#allocation0] sm:$0x1] %vm69, %v68
    %s71 = scalar_lea.vmem %s0, 4
    %v72 = vld [vmem:[%s71] sm:$0x1]
    %73 = vrot.lane.b32.xlu0 %v72, 32
    %v74 = vpop.permute.xlu0 %73
    %vm75 = vcmask 326912
    %76 = vst.msk [vmem:[#allocation0] sm:$0x1] %vm75, %v74
    %s77 = scalar_lea.vmem %s0, 3
    %v78 = vld [vmem:[%s77] sm:$0x1]
    %79 = vrot.lane.b32.xlu0 %v78, 24
    %v80 = vpop.permute.xlu0 %79
    %vm81 = vcmask 261312
    %82 = vst.msk [vmem:[#allocation0] sm:$0x1] %vm81, %v80
    %s83 = scalar_lea.vmem %s0, 2
    %v84 = vld [vmem:[%s83] sm:$0x1]
    %85 = vrot.lane.b32.xlu0 %v84, 16
    %v86 = vpop.permute.xlu0 %85
    %vm87 = vcmask 195712
    %88 = vst.msk [vmem:[#allocation0] sm:$0x1] %vm87, %v86
    %s89 = scalar_lea.vmem %s0, 1
    %v90 = vld [vmem:[%s89] sm:$0x1]
    %91 = vrot.lane.b32.xlu0 %v90, 8
    %v92 = vpop.permute.xlu0 %91
    %vm93 = vcmask 130112
    %94 = vst.msk [vmem:[#allocation0] sm:$0x1] %vm93, %v92
    %s96 = sshll.u32 1, 1
    %s97 = ssub.s32 %s96, 1
    %v99 = vld [vmem:[#allocation0] sm:%s97]
    %s100 = sshll.u32 1, 1
    %s101 = ssub.s32 %s100, 1
    %102 = vst [vmem:[%s1] sm:%s101] %v99

// kernel: spp_pruned.1
$region0: #{spp_pruned.1}
  #allocation0 [shape = 'u32[]', space=smem, size = 0x4, offset = 0x4, fixed_abs, tag = 'smem constant byte address 0x4 - core index']
  #allocation1 [shape = 'u32[144,128]{1,0:T(1,128)}', space=vmem, size = 0x12000, scoped, tag = 'internal scratch']
  #allocation2 [shape = 'f32[2,24,256]{2,1,0:T(8,128)}', space=vmem, size = 0xc000, scoped, tag = 'scratch operand']
  %s0 = inlined_call_operand.vmem [shape: f32[2,16,128], index: 0, kind: input, shape index: {}]
  %s1 = inlined_call_operand.vmem [shape: f32[128,128], index: 1, kind: input, shape index: {}]
  %s2 = inlined_call_operand.vmem [shape: f32[1,128], index: 2, kind: input, shape index: {}]
  %s3 = inlined_call_operand.vmem [shape: f32[4,128,128], index: 3, kind: input, shape index: {}]
  %s4 = inlined_call_operand.vmem [shape: f32[1,128], index: 4, kind: input, shape index: {}]
  %s5 = inlined_call_operand.vmem [shape: f32[2,16,128], index: 5, kind: output, shape index: {}]
  %s6 = sld [smem:[#allocation0]]
  $region30: #{spp_pruned.1} parent=0
    _
  %s8 = ssub.s32 1, %s6
  %s9 = scalar_select 0, %s8, %s6
  // Predicated region
  $region2: #{spp_pruned.1} parent=0 // pred_check
    _
  $region3: #{spp_pruned.1} parent=0 // pred_check_branch
    %11 = sbr.rel (0) target = $region5
  $region4: #{spp_pruned.1} parent=0 // pred_region
    _
  $region5: #{spp_pruned.1} parent=0 // pred_fallthru
    _
  // Predicated region
  $region6: #{spp_pruned.1} parent=0 // pred_check
    _
  $region7: #{spp_pruned.1} parent=0 // pred_check_branch
    %13 = sbr.rel (0) target = $region9
  $region8: #{spp_pruned.1} parent=0 // pred_region
    _
  $region9: #{spp_pruned.1} parent=0 // pred_fallthru
    _
  // Predicated region
  $region10: #{spp_pruned.1} parent=0 // pred_check
    _
  $region11: #{spp_pruned.1} parent=0 // pred_check_branch
    %15 = sbr.rel (0) target = $region13
  $region12: #{spp_pruned.1} parent=0 // pred_region
    _
  $region13: #{spp_pruned.1} parent=0 // pred_fallthru
    _
  // Predicated region
  $region14: #{spp_pruned.1} parent=0 // pred_check
    _
  $region15: #{spp_pruned.1} parent=0 // pred_check_branch
    %17 = sbr.rel (0) target = $region17
  $region16: #{spp_pruned.1} parent=0 // pred_region
    _
  $region17: #{spp_pruned.1} parent=0 // pred_fallthru
    _
  // Predicated region
  $region18: #{spp_pruned.1} parent=0 // pred_check
    _
  $region19: #{spp_pruned.1} parent=0 // pred_check_branch
    %19 = sbr.rel (0) target = $region21
  $region20: #{spp_pruned.1} parent=0 // pred_region
    _
  $region21: #{spp_pruned.1} parent=0 // pred_fallthru
    _
  %20 = vst [vmem:[#allocation2 + $0x20] sm:$0xff] -inf
  %21 = vst [vmem:[#allocation2 + $0x28] sm:$0xff] -inf
  %22 = vst [vmem:[#allocation2 + $0x50] sm:$0xff] -inf
  %23 = vst [vmem:[#allocation2 + $0x58] sm:$0xff] -inf
  %24 = vst [vmem:[#allocation2 + $0x8] sm:$0xff] -inf
  %25 = vst [vmem:[#allocation2 + $0x18] sm:$0xff] -inf
  %26 = vst [vmem:[#allocation2 + $0x38] sm:$0xff] -inf
  %27 = vst [vmem:[#allocation2 + $0x48] sm:$0xff] -inf
  %v28 = vld [vmem:[%s0] sm:$0xff]
  %v29 = vld [vmem:[%s0 + $0x8] sm:$0xff]
  %v30 = vld [vmem:[%s0 + $0x10] sm:$0xff]
  %v31 = vld [vmem:[%s0 + $0x18] sm:$0xff]
  %v32 = vld [vmem:[%s1] sm:$0xff]
  %v33 = vld [vmem:[%s1 + $0x8] sm:$0xff]
  %v34 = vld [vmem:[%s1 + $0x10] sm:$0xff]
  %v35 = vld [vmem:[%s1 + $0x18] sm:$0xff]
  %v36 = vld [vmem:[%s1 + $0x20] sm:$0xff]
  %v37 = vld [vmem:[%s1 + $0x28] sm:$0xff]
  %v38 = vld [vmem:[%s1 + $0x30] sm:$0xff]
  %v39 = vld [vmem:[%s1 + $0x38] sm:$0xff]
  %v40 = vld [vmem:[%s1 + $0x40] sm:$0xff]
  %v41 = vld [vmem:[%s1 + $0x48] sm:$0xff]
  %v42 = vld [vmem:[%s1 + $0x50] sm:$0xff]
  %v43 = vld [vmem:[%s1 + $0x58] sm:$0xff]
  %v44 = vld [vmem:[%s1 + $0x60] sm:$0xff]
  %v45 = vld [vmem:[%s1 + $0x68] sm:$0xff]
  %v46 = vld [vmem:[%s1 + $0x70] sm:$0xff]
  %v47 = vld [vmem:[%s1 + $0x78] sm:$0xff]
  %v48 = vld [vmem:[%s2] sm:$0x1]
  %v50 = vlaneseq
  %v51 = vshrl.u32 %v50, 7
  %v52 = vsub.s32 0, %v51
  %v53 = vrot.slane %v48, %v52
  %55 = vmatprep.subr.mxu0 0.0
  %56 = vmatpush1.msra.mxu0 %v47
  %57 = vmatprep.subr.mxu0 0.0
  %58 = vmatpush1.msra.mxu0 %v46
  %59 = vmatprep.subr.mxu0 0.0
  %60 = vmatpush1.msra.mxu0 %v45
  %61 = vmatprep.subr.mxu0 0.0
  %62 = vmatpush1.msra.mxu0 %v44
  %63 = vmatprep.subr.mxu0 0.0
  %64 = vmatpush1.msra.mxu0 %v43
  %65 = vmatprep.subr.mxu0 0.0
  %66 = vmatpush1.msra.mxu0 %v42
  %67 = vmatprep.subr.mxu0 0.0
  %68 = vmatpush1.msra.mxu0 %v41
  %69 = vmatprep.subr.mxu0 0.0
  %70 = vmatpush1.msra.mxu0 %v40
  %71 = vmatprep.subr.mxu0 0.0
  %72 = vmatpush1.msra.mxu0 %v39
  %73 = vmatprep.subr.mxu0 0.0
  %74 = vmatpush1.msra.mxu0 %v38
  %75 = vmatprep.subr.mxu0 0.0
  %76 = vmatpush1.msra.mxu0 %v37
  %77 = vmatprep.subr.mxu0 0.0
  %78 = vmatpush1.msra.mxu0 %v36
  %79 = vmatprep.subr.mxu0 0.0
  %80 = vmatpush1.msra.mxu0 %v35
  %81 = vmatprep.subr.mxu0 0.0
  %82 = vmatpush1.msra.mxu0 %v34
  %83 = vmatprep.subr.mxu0 0.0
  %84 = vmatpush1.msra.mxu0 %v33
  %85 = vmatprep.subr.mxu0 0.0
  %86 = vmatpush1.msra.mxu0 %v32
  %87 = vmatprep.subr.mxu0 0.0
  %88 = vmatpush2.msra.mxu0 0.0
  %89 = vmatprep.subr.mxu0 0.0
  %90 = vmatpush2.msra.mxu0 0.0
  %91 = vmatprep.subr.mxu0 0.0
  %92 = vmatpush2.msra.mxu0 0.0
  %93 = vmatprep.subr.mxu0 0.0
  %94 = vmatpush2.msra.mxu0 0.0
  %95 = vmatprep.subr.mxu0 0.0
  %96 = vmatpush2.msra.mxu0 0.0
  %97 = vmatprep.subr.mxu0 0.0
  %98 = vmatpush2.msra.mxu0 0.0
  %99 = vmatprep.subr.mxu0 0.0
  %100 = vmatpush2.msra.mxu0 0.0
  %101 = vmatprep.subr.mxu0 0.0
  %102 = vmatpush2.msra.mxu0 0.0
  %103 = vmatprep.subr.mxu0 0.0
  %104 = vmatpush2.msra.mxu0 0.0
  %105 = vmatprep.subr.mxu0 0.0
  %106 = vmatpush2.msra.mxu0 0.0
  %107 = vmatprep.subr.mxu0 0.0
  %108 = vmatpush2.msra.mxu0 0.0
  %109 = vmatprep.subr.mxu0 0.0
  %110 = vmatpush2.msra.mxu0 0.0
  %111 = vmatprep.subr.mxu0 0.0
  %112 = vmatpush2.msra.mxu0 0.0
  %113 = vmatprep.subr.mxu0 0.0
  %114 = vmatpush2.msra.mxu0 0.0
  %115 = vmatprep.subr.mxu0 0.0
  %116 = vmatpush2.msra.mxu0 0.0
  %117 = vmatprep.subr.mxu0 0.0
  %118 = vmatpush2.msra.mxu0 0.0
  %119 = vmatprep.mubr.f32.mxu0 0.0
  %120 = vmatmul.mubr.f32.gmra.mxu0 %v28
  %v121 = vpop.f32.mrf.mxu0
  %v122 = vadd.f32 %v53, %v121
  %v123 = vpop.f32.mrf.mxu0
  %124 = vmatprep.mubr.f32.mxu0 0.0
  %125 = vmatmul.mubr.f32.gmra.mxu0 %v29
  %v126 = vpop.f32.mrf.mxu0
  %v127 = vadd.f32 %v53, %v126
  %v128 = vpop.f32.mrf.mxu0
  %129 = vmatprep.mubr.f32.mxu0 0.0
  %130 = vmatmul.mubr.f32.gmra.mxu0 %v30
  %v131 = vpop.f32.mrf.mxu0
  %v132 = vadd.f32 %v53, %v131
  %v133 = vpop.f32.mrf.mxu0
  %134 = vmatprep.mubr.f32.mxu0 0.0
  %135 = vmatmul.mubr.f32.gmra.mxu0 %v31
  %v136 = vpop.f32.mrf.mxu0
  %v137 = vadd.f32 %v53, %v136
  %v138 = vpop.f32.mrf.mxu0
  %139 = vdwg.mxu0
  %v140 = vxor.u32 %v122, 2147483648
  %v141 = vxor.u32 %v127, 2147483648
  %v142 = vxor.u32 %v132, 2147483648
  %v143 = vxor.u32 %v137, 2147483648
  %v144 = vmul.f32 %v140, 1.442695
  %v145 = vpow.pop %v144
  %v146 = vmul.f32 %v141, 1.442695
  %v147 = vpow.pop %v146
  %v148 = vmul.f32 %v142, 1.442695
  %v149 = vpow.pop %v148
  %v150 = vmul.f32 %v143, 1.442695
  %v151 = vpow.pop %v150
  %v152 = vadd.f32 %v145, 1.0
  %v153 = vadd.f32 %v147, 1.0
  %v154 = vadd.f32 %v149, 1.0
  %v155 = vadd.f32 %v151, 1.0
  %v156 = vrcp.pop %v152
  %v157 = vmul.f32 1.0, %v156
  %v158 = vrcp.pop %v153
  %v159 = vmul.f32 1.0, %v158
  %v160 = vrcp.pop %v154
  %v161 = vmul.f32 1.0, %v160
  %v162 = vrcp.pop %v155
  %v163 = vmul.f32 1.0, %v162
  %v164 = vmul.f32 %v122, %v157
  %v165 = vmul.f32 %v127, %v159
  %v166 = vmul.f32 %v132, %v161
  %v167 = vmul.f32 %v137, %v163
  %v168 = vld [vmem:[%s3] sm:$0xff]
  %v169 = vld [vmem:[%s3 + $0x8] sm:$0xff]
  %v170 = vld [vmem:[%s3 + $0x10] sm:$0xff]
  %v171 = vld [vmem:[%s3 + $0x18] sm:$0xff]
  %v172 = vld [vmem:[%s3 + $0x20] sm:$0xff]
  %v173 = vld [vmem:[%s3 + $0x28] sm:$0xff]
  %v174 = vld [vmem:[%s3 + $0x30] sm:$0xff]
  %v175 = vld [vmem:[%s3 + $0x38] sm:$0xff]
  %v176 = vld [vmem:[%s3 + $0x40] sm:$0xff]
  %v177 = vld [vmem:[%s3 + $0x48] sm:$0xff]
  %v178 = vld [vmem:[%s3 + $0x50] sm:$0xff]
  %v179 = vld [vmem:[%s3 + $0x58] sm:$0xff]
  %v180 = vld [vmem:[%s3 + $0x60] sm:$0xff]
  %v181 = vld [vmem:[%s3 + $0x68] sm:$0xff]
  %v182 = vld [vmem:[%s3 + $0x70] sm:$0xff]
  %v183 = vld [vmem:[%s3 + $0x78] sm:$0xff]
  %184 = vst [vmem:[#allocation2] sm:$0xff] %v164
  %185 = vst [vmem:[#allocation2 + $0x10] sm:$0xff] %v165
  %186 = vst [vmem:[#allocation2 + $0x30] sm:$0xff] %v166
  %187 = vst [vmem:[#allocation2 + $0x40] sm:$0xff] %v167
  %v188 = vld [vmem:[#allocation2] sm:$0xff]
  %v189 = vld [vmem:[#allocation2 + $0x8] sm:$0xff]
  %v190 = vld [vmem:[#allocation2 + $0x10] sm:$0xff]
  %v191 = vld [vmem:[#allocation2 + $0x18] sm:$0xff]
  %v192 = vld [vmem:[#allocation2 + $0x20] sm:$0xff]
  %v193 = vld [vmem:[#allocation2 + $0x28] sm:$0xff]
  %v194 = vld [vmem:[#allocation2 + $0x30] sm:$0xff]
  %v195 = vld [vmem:[#allocation2 + $0x38] sm:$0xff]
  %v196 = vld [vmem:[#allocation2 + $0x40] sm:$0xff]
  %v197 = vld [vmem:[#allocation2 + $0x48] sm:$0xff]
  %v198 = vld [vmem:[#allocation2 + $0x50] sm:$0xff]
  %v199 = vld [vmem:[#allocation2 + $0x58] sm:$0xff]
  %200 = vrot.lane.b32.xlu0 %v188, 8
  %v201 = vpop.permute.xlu0 %200
  %202 = vrot.lane.b32.xlu0 %v190, 8
  %v203 = vpop.permute.xlu0 %202
  %204 = vrot.lane.b32.xlu0 %v192, 8
  %v205 = vpop.permute.xlu0 %204
  %206 = vrot.lane.b32.xlu0 %v194, 8
  %v207 = vpop.permute.xlu0 %206
  %208 = vrot.lane.b32.xlu0 %v196, 8
  %v209 = vpop.permute.xlu0 %208
  %210 = vrot.lane.b32.xlu0 %v198, 8
  %v211 = vpop.permute.xlu0 %210
  %212 = vrot.lane.b32.xlu0 %v189, 8
  %v213 = vpop.permute.xlu0 %212
  %214 = vrot.lane.b32.xlu0 %v191, 8
  %v215 = vpop.permute.xlu0 %214
  %216 = vrot.lane.b32.xlu0 %v193, 8
  %v217 = vpop.permute.xlu0 %216
  %218 = vrot.lane.b32.xlu0 %v195, 8
  %v219 = vpop.permute.xlu0 %218
  %220 = vrot.lane.b32.xlu0 %v197, 8
  %v221 = vpop.permute.xlu0 %220
  %222 = vrot.lane.b32.xlu0 %v199, 8
  %v223 = vpop.permute.xlu0 %222
  %v224 = vlaneseq
  %v225 = vand.u32 %v224, 127
  %vm226 = vcmp.lt.s32.totalorder %v225, 8
  %v227 = vsel %vm226, %v201, %v213
  %v228 = vsel %vm226, %v203, %v215
  %v229 = vsel %vm226, %v205, %v217
  %v230 = vsel %vm226, %v207, %v219
  %v231 = vsel %vm226, %v209, %v221
  %v232 = vsel %vm226, %v211, %v223
  %v233 = vsel %vm226, %v213, %v201
  %v234 = vsel %vm226, %v215, %v203
  %v235 = vsel %vm226, %v217, %v205
  %v236 = vsel %vm226, %v219, %v207
  %v237 = vsel %vm226, %v221, %v209
  %v238 = vsel %vm226, %v223, %v211
  %v239 = vmax.f32 %v188, %v233
  %v240 = vmax.f32 %v189, %v227
  %v241 = vmax.f32 %v190, %v234
  %v242 = vmax.f32 %v191, %v228
  %v243 = vmax.f32 %v192, %v235
  %v244 = vmax.f32 %v193, %v229
  %v245 = vmax.f32 %v194, %v236
  %v246 = vmax.f32 %v195, %v230
  %v247 = vmax.f32 %v196, %v237
  %v248 = vmax.f32 %v197, %v231
  %v249 = vmax.f32 %v198, %v238
  %v250 = vmax.f32 %v199, %v232
  %251 = vrot.lane.b32.xlu0 %v239, 112
  %v252 = vpop.permute.xlu0 %251
  %253 = vrot.lane.b32.xlu0 %v241, 112
  %v254 = vpop.permute.xlu0 %253
  %255 = vrot.lane.b32.xlu0 %v243, 112
  %v256 = vpop.permute.xlu0 %255
  %257 = vrot.lane.b32.xlu0 %v245, 112
  %v258 = vpop.permute.xlu0 %257
  %259 = vrot.lane.b32.xlu0 %v247, 112
  %v260 = vpop.permute.xlu0 %259
  %261 = vrot.lane.b32.xlu0 %v249, 112
  %v262 = vpop.permute.xlu0 %261
  %263 = vrot.lane.b32.xlu0 %v240, 112
  %v264 = vpop.permute.xlu0 %263
  %265 = vrot.lane.b32.xlu0 %v242, 112
  %v266 = vpop.permute.xlu0 %265
  %267 = vrot.lane.b32.xlu0 %v244, 112
  %v268 = vpop.permute.xlu0 %267
  %269 = vrot.lane.b32.xlu0 %v246, 112
  %v270 = vpop.permute.xlu0 %269
  %271 = vrot.lane.b32.xlu0 %v248, 112
  %v272 = vpop.permute.xlu0 %271
  %273 = vrot.lane.b32.xlu0 %v250, 112
  %v274 = vpop.permute.xlu0 %273
  %vm275 = vcmp.lt.s32.totalorder %v225, 112
  %v276 = vsel %vm275, %v252, %v264
  %v277 = vsel %vm275, %v254, %v266
  %v278 = vsel %vm275, %v256, %v268
  %v279 = vsel %vm275, %v258, %v270
  %v280 = vsel %vm275, %v260, %v272
  %v281 = vsel %vm275, %v262, %v274
  %v282 = vmax.f32 %v239, %v276
  %v283 = vmax.f32 %v241, %v277
  %v284 = vmax.f32 %v243, %v278
  %v285 = vmax.f32 %v245, %v279
  %v286 = vmax.f32 %v247, %v280
  %v287 = vmax.f32 %v249, %v281
  %288 = vrot.lane.b32.xlu0 %v188, 16
  %v289 = vpop.permute.xlu0 %288
  %290 = vrot.lane.b32.xlu0 %v190, 16
  %v291 = vpop.permute.xlu0 %290
  %292 = vrot.lane.b32.xlu0 %v192, 16
  %v293 = vpop.permute.xlu0 %292
  %294 = vrot.lane.b32.xlu0 %v194, 16
  %v295 = vpop.permute.xlu0 %294
  %296 = vrot.lane.b32.xlu0 %v196, 16
  %v297 = vpop.permute.xlu0 %296
  %298 = vrot.lane.b32.xlu0 %v198, 16
  %v299 = vpop.permute.xlu0 %298
  %300 = vrot.lane.b32.xlu0 %v189, 16
  %v301 = vpop.permute.xlu0 %300
  %302 = vrot.lane.b32.xlu0 %v191, 16
  %v303 = vpop.permute.xlu0 %302
  %304 = vrot.lane.b32.xlu0 %v193, 16
  %v305 = vpop.permute.xlu0 %304
  %306 = vrot.lane.b32.xlu0 %v195, 16
  %v307 = vpop.permute.xlu0 %306
  %308 = vrot.lane.b32.xlu0 %v197, 16
  %v309 = vpop.permute.xlu0 %308
  %310 = vrot.lane.b32.xlu0 %v199, 16
  %v311 = vpop.permute.xlu0 %310
  %vm312 = vcmp.lt.s32.totalorder %v225, 16
  %v313 = vsel %vm312, %v301, %v289
  %v314 = vsel %vm312, %v303, %v291
  %v315 = vsel %vm312, %v305, %v293
  %v316 = vsel %vm312, %v307, %v295
  %v317 = vsel %vm312, %v309, %v297
  %v318 = vsel %vm312, %v311, %v299
  %v319 = vmax.f32 %v282, %v313
  %v320 = vmax.f32 %v283, %v314
  %v321 = vmax.f32 %v284, %v315
  %v322 = vmax.f32 %v285, %v316
  %v323 = vmax.f32 %v286, %v317
  %v324 = vmax.f32 %v287, %v318
  %v325 = vrot.slane %v319, 7
  %v326 = vrot.slane %v320, 7
  %v327 = vrot.slane %v321, 7
  %v328 = vlaneseq
  %v329 = vshrl.u32 %v328, 7
  %vm330 = vcmp.lt.s32.totalorder %v329, 1
  %v331 = vsel %vm330, %v326, %v327
  %v332 = vsel %vm330, %v325, %v326
  %v333 = vsel %vm330, %v327, %v325
  %v334 = vmax.f32 %v319, %v333
  %v335 = vmax.f32 %v320, %v332
  %v336 = vmax.f32 %v321, %v331
  %v337 = vrot.slane %v334, 2
  %v338 = vrot.slane %v335, 2
  %v339 = vrot.slane %v336, 2
  %vm340 = vcmp.lt.s32.totalorder %v329, 6
  %v341 = vsel %vm340, %v338, %v339
  %v342 = vsel %vm340, %v337, %v338
  %v343 = vmax.f32 %v334, %v342
  %v344 = vmax.f32 %v335, %v341
  %v345 = vrot.slane %v319, 6
  %v346 = vrot.slane %v320, 6
  %v347 = vrot.slane %v321, 6
  %vm348 = vcmp.lt.s32.totalorder %v329, 2
  %v349 = vsel %vm348, %v345, %v346
  %v350 = vsel %vm348, %v347, %v345
  %v351 = vmax.f32 %v343, %v350
  %v352 = vmax.f32 %v344, %v349
  %353 = vst [vmem:[#allocation2] sm:$0xff] %v351
  %354 = vst [vmem:[#allocation2 + $0x10] sm:$0xff] %v352
  %v355 = vrot.slane %v322, 7
  %v356 = vrot.slane %v323, 7
  %v357 = vrot.slane %v324, 7
  %v358 = vsel %vm330, %v356, %v357
  %v359 = vsel %vm330, %v355, %v356
  %v360 = vsel %vm330, %v357, %v355
  %v361 = vmax.f32 %v322, %v360
  %v362 = vmax.f32 %v323, %v359
  %v363 = vmax.f32 %v324, %v358
  %v364 = vrot.slane %v361, 2
  %v365 = vrot.slane %v362, 2
  %v366 = vrot.slane %v363, 2
  %v367 = vsel %vm340, %v365, %v366
  %v368 = vsel %vm340, %v364, %v365
  %v369 = vmax.f32 %v361, %v368
  %v370 = vmax.f32 %v362, %v367
  %v371 = vrot.slane %v322, 6
  %v372 = vrot.slane %v323, 6
  %v373 = vrot.slane %v324, 6
  %v374 = vsel %vm348, %v371, %v372
  %v375 = vsel %vm348, %v373, %v371
  %v376 = vmax.f32 %v369, %v375
  %v377 = vmax.f32 %v370, %v374
  %s378 = scalar_lea.vmem [#allocation2], 48
  %379 = vst [vmem:[%s378] sm:$0xff] %v376
  %380 = vst [vmem:[%s378 + $0x10] sm:$0xff] %v377
  %s381 = scalar_lea.vmem %s3, 128
  %v382 = vld [vmem:[%s381] sm:$0xff]
  %v383 = vld [vmem:[%s381 + $0x8] sm:$0xff]
  %v384 = vld [vmem:[%s381 + $0x10] sm:$0xff]
  %v385 = vld [vmem:[%s381 + $0x18] sm:$0xff]
  %v386 = vld [vmem:[%s381 + $0x20] sm:$0xff]
  %v387 = vld [vmem:[%s381 + $0x28] sm:$0xff]
  %v388 = vld [vmem:[%s381 + $0x30] sm:$0xff]
  %v389 = vld [vmem:[%s381 + $0x38] sm:$0xff]
  %v390 = vld [vmem:[%s381 + $0x40] sm:$0xff]
  %v391 = vld [vmem:[%s381 + $0x48] sm:$0xff]
  %v392 = vld [vmem:[%s381 + $0x50] sm:$0xff]
  %v393 = vld [vmem:[%s381 + $0x58] sm:$0xff]
  %v394 = vld [vmem:[%s381 + $0x60] sm:$0xff]
  %v395 = vld [vmem:[%s381 + $0x68] sm:$0xff]
  %v396 = vld [vmem:[%s381 + $0x70] sm:$0xff]
  %v397 = vld [vmem:[%s381 + $0x78] sm:$0xff]
  %398 = vmatprep.subr.mxu0 0.0
  %399 = vmatpush1.msra.mxu0 %v397
  %400 = vmatprep.subr.mxu0 0.0
  %401 = vmatpush1.msra.mxu0 %v396
  %402 = vmatprep.subr.mxu0 0.0
  %403 = vmatpush1.msra.mxu0 %v395
  %404 = vmatprep.subr.mxu0 0.0
  %405 = vmatpush1.msra.mxu0 %v394
  %406 = vmatprep.subr.mxu0 0.0
  %407 = vmatpush1.msra.mxu0 %v393
  %408 = vmatprep.subr.mxu0 0.0
  %409 = vmatpush1.msra.mxu0 %v392
  %410 = vmatprep.subr.mxu0 0.0
  %411 = vmatpush1.msra.mxu0 %v391
  %412 = vmatprep.subr.mxu0 0.0
  %413 = vmatpush1.msra.mxu0 %v390
  %414 = vmatprep.subr.mxu0 0.0
  %415 = vmatpush1.msra.mxu0 %v389
  %416 = vmatprep.subr.mxu0 0.0
  %417 = vmatpush1.msra.mxu0 %v388
  %418 = vmatprep.subr.mxu0 0.0
  %419 = vmatpush1.msra.mxu0 %v387
  %420 = vmatprep.subr.mxu0 0.0
  %421 = vmatpush1.msra.mxu0 %v386
  %422 = vmatprep.subr.mxu0 0.0
  %423 = vmatpush1.msra.mxu0 %v385
  %424 = vmatprep.subr.mxu0 0.0
  %425 = vmatpush1.msra.mxu0 %v384
  %426 = vmatprep.subr.mxu0 0.0
  %427 = vmatpush1.msra.mxu0 %v383
  %428 = vmatprep.subr.mxu0 0.0
  %429 = vmatpush1.msra.mxu0 %v382
  %430 = vmatprep.subr.mxu0 0.0
  %431 = vmatpush2.msra.mxu0 0.0
  %432 = vmatprep.subr.mxu0 0.0
  %433 = vmatpush2.msra.mxu0 0.0
  %434 = vmatprep.subr.mxu0 0.0
  %435 = vmatpush2.msra.mxu0 0.0
  %436 = vmatprep.subr.mxu0 0.0
  %437 = vmatpush2.msra.mxu0 0.0
  %438 = vmatprep.subr.mxu0 0.0
  %439 = vmatpush2.msra.mxu0 0.0
  %440 = vmatprep.subr.mxu0 0.0
  %441 = vmatpush2.msra.mxu0 0.0
  %442 = vmatprep.subr.mxu0 0.0
  %443 = vmatpush2.msra.mxu0 0.0
  %444 = vmatprep.subr.mxu0 0.0
  %445 = vmatpush2.msra.mxu0 0.0
  %446 = vmatprep.subr.mxu0 0.0
  %447 = vmatpush2.msra.mxu0 0.0
  %448 = vmatprep.subr.mxu0 0.0
  %449 = vmatpush2.msra.mxu0 0.0
  %450 = vmatprep.subr.mxu0 0.0
  %451 = vmatpush2.msra.mxu0 0.0
  %452 = vmatprep.subr.mxu0 0.0
  %453 = vmatpush2.msra.mxu0 0.0
  %454 = vmatprep.subr.mxu0 0.0
  %455 = vmatpush2.msra.mxu0 0.0
  %456 = vmatprep.subr.mxu0 0.0
  %457 = vmatpush2.msra.mxu0 0.0
  %458 = vmatprep.subr.mxu0 0.0
  %459 = vmatpush2.msra.mxu0 0.0
  %460 = vmatprep.subr.mxu0 0.0
  %461 = vmatpush2.msra.mxu0 0.0
  %462 = vmatprep.mubr.f32.mxu0 0.0
  %463 = vmatmul.mubr.f32.gmra.mxu0 %v351
  %v464 = vpop.f32.mrf.mxu0
  %v465 = vadd.f32 0.0, %v464
  %v466 = vpop.f32.mrf.mxu0
  %467 = vmatprep.mubr.f32.mxu0 0.0
  %468 = vmatmul.mubr.f32.gmra.mxu0 %v352
  %v469 = vpop.f32.mrf.mxu0
  %v470 = vadd.f32 0.0, %v469
  %v471 = vpop.f32.mrf.mxu0
  %472 = vmatprep.mubr.f32.mxu0 0.0
  %473 = vmatmul.mubr.f32.gmra.mxu0 %v376
  %v474 = vpop.f32.mrf.mxu0
  %v475 = vadd.f32 0.0, %v474
  %v476 = vpop.f32.mrf.mxu0
  %477 = vmatprep.mubr.f32.mxu0 0.0
  %478 = vmatmul.mubr.f32.gmra.mxu0 %v377
  %v479 = vpop.f32.mrf.mxu0
  %v480 = vadd.f32 0.0, %v479
  %v481 = vpop.f32.mrf.mxu0
  %482 = vdwg.mxu0
  %483 = vmatprep.subr.mxu0 0.0
  %484 = vmatpush1.msra.mxu0 %v183
  %485 = vmatprep.subr.mxu0 0.0
  %486 = vmatpush1.msra.mxu0 %v182
  %487 = vmatprep.subr.mxu0 0.0
  %488 = vmatpush1.msra.mxu0 %v181
  %489 = vmatprep.subr.mxu0 0.0
  %490 = vmatpush1.msra.mxu0 %v180
  %491 = vmatprep.subr.mxu0 0.0
  %492 = vmatpush1.msra.mxu0 %v179
  %493 = vmatprep.subr.mxu0 0.0
  %494 = vmatpush1.msra.mxu0 %v178
  %495 = vmatprep.subr.mxu0 0.0
  %496 = vmatpush1.msra.mxu0 %v177
  %497 = vmatprep.subr.mxu0 0.0
  %498 = vmatpush1.msra.mxu0 %v176
  %499 = vmatprep.subr.mxu0 0.0
  %500 = vmatpush1.msra.mxu0 %v175
  %501 = vmatprep.subr.mxu0 0.0
  %502 = vmatpush1.msra.mxu0 %v174
  %503 = vmatprep.subr.mxu0 0.0
  %504 = vmatpush1.msra.mxu0 %v173
  %505 = vmatprep.subr.mxu0 0.0
  %506 = vmatpush1.msra.mxu0 %v172
  %507 = vmatprep.subr.mxu0 0.0
  %508 = vmatpush1.msra.mxu0 %v171
  %509 = vmatprep.subr.mxu0 0.0
  %510 = vmatpush1.msra.mxu0 %v170
  %511 = vmatprep.subr.mxu0 0.0
  %512 = vmatpush1.msra.mxu0 %v169
  %513 = vmatprep.subr.mxu0 0.0
  %514 = vmatpush1.msra.mxu0 %v168
  %515 = vmatprep.subr.mxu0 0.0
  %516 = vmatpush2.msra.mxu0 0.0
  %517 = vmatprep.subr.mxu0 0.0
  %518 = vmatpush2.msra.mxu0 0.0
  %519 = vmatprep.subr.mxu0 0.0
  %520 = vmatpush2.msra.mxu0 0.0
  %521 = vmatprep.subr.mxu0 0.0
  %522 = vmatpush2.msra.mxu0 0.0
  %523 = vmatprep.subr.mxu0 0.0
  %524 = vmatpush2.msra.mxu0 0.0
  %525 = vmatprep.subr.mxu0 0.0
  %526 = vmatpush2.msra.mxu0 0.0
  %527 = vmatprep.subr.mxu0 0.0
  %528 = vmatpush2.msra.mxu0 0.0
  %529 = vmatprep.subr.mxu0 0.0
  %530 = vmatpush2.msra.mxu0 0.0
  %531 = vmatprep.subr.mxu0 0.0
  %532 = vmatpush2.msra.mxu0 0.0
  %533 = vmatprep.subr.mxu0 0.0
  %534 = vmatpush2.msra.mxu0 0.0
  %535 = vmatprep.subr.mxu0 0.0
  %536 = vmatpush2.msra.mxu0 0.0
  %537 = vmatprep.subr.mxu0 0.0
  %538 = vmatpush2.msra.mxu0 0.0
  %539 = vmatprep.subr.mxu0 0.0
  %540 = vmatpush2.msra.mxu0 0.0
  %541 = vmatprep.subr.mxu0 0.0
  %542 = vmatpush2.msra.mxu0 0.0
  %543 = vmatprep.subr.mxu0 0.0
  %544 = vmatpush2.msra.mxu0 0.0
  %545 = vmatprep.subr.mxu0 0.0
  %546 = vmatpush2.msra.mxu0 0.0
  %547 = vmatprep.mubr.f32.mxu0 0.0
  %548 = vmatmul.mubr.f32.gmra.mxu0 %v164
  %v549 = vpop.f32.mrf.mxu0
  %v550 = vadd.f32 %v465, %v549
  %v551 = vpop.f32.mrf.mxu0
  %552 = vmatprep.mubr.f32.mxu0 0.0
  %553 = vmatmul.mubr.f32.gmra.mxu0 %v165
  %v554 = vpop.f32.mrf.mxu0
  %v555 = vadd.f32 %v470, %v554
  %v556 = vpop.f32.mrf.mxu0
  %557 = vmatprep.mubr.f32.mxu0 0.0
  %558 = vmatmul.mubr.f32.gmra.mxu0 %v166
  %v559 = vpop.f32.mrf.mxu0
  %v560 = vadd.f32 %v475, %v559
  %v561 = vpop.f32.mrf.mxu0
  %562 = vmatprep.mubr.f32.mxu0 0.0
  %563 = vmatmul.mubr.f32.gmra.mxu0 %v167
  %v564 = vpop.f32.mrf.mxu0
  %v565 = vadd.f32 %v480, %v564
  %v566 = vpop.f32.mrf.mxu0
  %567 = vdwg.mxu0
  %v568 = vld [vmem:[#allocation2] sm:$0xff]
  %v569 = vld [vmem:[#allocation2 + $0x8] sm:$0xff]
  %v570 = vld [vmem:[#allocation2 + $0x10] sm:$0xff]
  %v571 = vld [vmem:[#allocation2 + $0x18] sm:$0xff]
  %v572 = vld [vmem:[#allocation2 + $0x20] sm:$0xff]
  %v573 = vld [vmem:[#allocation2 + $0x28] sm:$0xff]
  %v574 = vld [vmem:[#allocation2 + $0x30] sm:$0xff]
  %v575 = vld [vmem:[#allocation2 + $0x38] sm:$0xff]
  %v576 = vld [vmem:[#allocation2 + $0x40] sm:$0xff]
  %v577 = vld [vmem:[#allocation2 + $0x48] sm:$0xff]
  %v578 = vld [vmem:[#allocation2 + $0x50] sm:$0xff]
  %v579 = vld [vmem:[#allocation2 + $0x58] sm:$0xff]
  %580 = vrot.lane.b32.xlu0 %v568, 8
  %v581 = vpop.permute.xlu0 %580
  %582 = vrot.lane.b32.xlu0 %v570, 8
  %v583 = vpop.permute.xlu0 %582
  %584 = vrot.lane.b32.xlu0 %v572, 8
  %v585 = vpop.permute.xlu0 %584
  %586 = vrot.lane.b32.xlu0 %v574, 8
  %v587 = vpop.permute.xlu0 %586
  %588 = vrot.lane.b32.xlu0 %v576, 8
  %v589 = vpop.permute.xlu0 %588
  %590 = vrot.lane.b32.xlu0 %v578, 8
  %v591 = vpop.permute.xlu0 %590
  %592 = vrot.lane.b32.xlu0 %v569, 8
  %v593 = vpop.permute.xlu0 %592
  %594 = vrot.lane.b32.xlu0 %v571, 8
  %v595 = vpop.permute.xlu0 %594
  %596 = vrot.lane.b32.xlu0 %v573, 8
  %v597 = vpop.permute.xlu0 %596
  %598 = vrot.lane.b32.xlu0 %v575, 8
  %v599 = vpop.permute.xlu0 %598
  %600 = vrot.lane.b32.xlu0 %v577, 8
  %v601 = vpop.permute.xlu0 %600
  %602 = vrot.lane.b32.xlu0 %v579, 8
  %v603 = vpop.permute.xlu0 %602
  %v604 = vsel %vm226, %v581, %v593
  %v605 = vsel %vm226, %v583, %v595
  %v606 = vsel %vm226, %v585, %v597
  %v607 = vsel %vm226, %v587, %v599
  %v608 = vsel %vm226, %v589, %v601
  %v609 = vsel %vm226, %v591, %v603
  %v610 = vsel %vm226, %v593, %v581
  %v611 = vsel %vm226, %v595, %v583
  %v612 = vsel %vm226, %v597, %v585
  %v613 = vsel %vm226, %v599, %v587
  %v614 = vsel %vm226, %v601, %v589
  %v615 = vsel %vm226, %v603, %v591
  %v616 = vmax.f32 %v568, %v610
  %v617 = vmax.f32 %v569, %v604
  %v618 = vmax.f32 %v570, %v611
  %v619 = vmax.f32 %v571, %v605
  %v620 = vmax.f32 %v572, %v612
  %v621 = vmax.f32 %v573, %v606
  %v622 = vmax.f32 %v574, %v613
  %v623 = vmax.f32 %v575, %v607
  %v624 = vmax.f32 %v576, %v614
  %v625 = vmax.f32 %v577, %v608
  %v626 = vmax.f32 %v578, %v615
  %v627 = vmax.f32 %v579, %v609
  %628 = vrot.lane.b32.xlu0 %v616, 112
  %v629 = vpop.permute.xlu0 %628
  %630 = vrot.lane.b32.xlu0 %v618, 112
  %v631 = vpop.permute.xlu0 %630
  %632 = vrot.lane.b32.xlu0 %v620, 112
  %v633 = vpop.permute.xlu0 %632
  %634 = vrot.lane.b32.xlu0 %v622, 112
  %v635 = vpop.permute.xlu0 %634
  %636 = vrot.lane.b32.xlu0 %v624, 112
  %v637 = vpop.permute.xlu0 %636
  %638 = vrot.lane.b32.xlu0 %v626, 112
  %v639 = vpop.permute.xlu0 %638
  %640 = vrot.lane.b32.xlu0 %v617, 112
  %v641 = vpop.permute.xlu0 %640
  %642 = vrot.lane.b32.xlu0 %v619, 112
  %v643 = vpop.permute.xlu0 %642
  %644 = vrot.lane.b32.xlu0 %v621, 112
  %v645 = vpop.permute.xlu0 %644
  %646 = vrot.lane.b32.xlu0 %v623, 112
  %v647 = vpop.permute.xlu0 %646
  %648 = vrot.lane.b32.xlu0 %v625, 112
  %v649 = vpop.permute.xlu0 %648
  %650 = vrot.lane.b32.xlu0 %v627, 112
  %v651 = vpop.permute.xlu0 %650
  %v652 = vsel %vm275, %v629, %v641
  %v653 = vsel %vm275, %v631, %v643
  %v654 = vsel %vm275, %v633, %v645
  %v655 = vsel %vm275, %v635, %v647
  %v656 = vsel %vm275, %v637, %v649
  %v657 = vsel %vm275, %v639, %v651
  %v658 = vmax.f32 %v616, %v652
  %v659 = vmax.f32 %v618, %v653
  %v660 = vmax.f32 %v620, %v654
  %v661 = vmax.f32 %v622, %v655
  %v662 = vmax.f32 %v624, %v656
  %v663 = vmax.f32 %v626, %v657
  %664 = vrot.lane.b32.xlu0 %v568, 16
  %v665 = vpop.permute.xlu0 %664
  %666 = vrot.lane.b32.xlu0 %v570, 16
  %v667 = vpop.permute.xlu0 %666
  %668 = vrot.lane.b32.xlu0 %v572, 16
  %v669 = vpop.permute.xlu0 %668
  %670 = vrot.lane.b32.xlu0 %v574, 16
  %v671 = vpop.permute.xlu0 %670
  %672 = vrot.lane.b32.xlu0 %v576, 16
  %v673 = vpop.permute.xlu0 %672
  %674 = vrot.lane.b32.xlu0 %v578, 16
  %v675 = vpop.permute.xlu0 %674
  %676 = vrot.lane.b32.xlu0 %v569, 16
  %v677 = vpop.permute.xlu0 %676
  %678 = vrot.lane.b32.xlu0 %v571, 16
  %v679 = vpop.permute.xlu0 %678
  %680 = vrot.lane.b32.xlu0 %v573, 16
  %v681 = vpop.permute.xlu0 %680
  %682 = vrot.lane.b32.xlu0 %v575, 16
  %v683 = vpop.permute.xlu0 %682
  %684 = vrot.lane.b32.xlu0 %v577, 16
  %v685 = vpop.permute.xlu0 %684
  %686 = vrot.lane.b32.xlu0 %v579, 16
  %v687 = vpop.permute.xlu0 %686
  %v688 = vsel %vm312, %v677, %v665
  %v689 = vsel %vm312, %v679, %v667
  %v690 = vsel %vm312, %v681, %v669
  %v691 = vsel %vm312, %v683, %v671
  %v692 = vsel %vm312, %v685, %v673
  %v693 = vsel %vm312, %v687, %v675
  %v694 = vmax.f32 %v658, %v688
  %v695 = vmax.f32 %v659, %v689
  %v696 = vmax.f32 %v660, %v690
  %v697 = vmax.f32 %v661, %v691
  %v698 = vmax.f32 %v662, %v692
  %v699 = vmax.f32 %v663, %v693
  %v700 = vrot.slane %v694, 7
  %v701 = vrot.slane %v695, 7
  %v702 = vrot.slane %v696, 7
  %v703 = vsel %vm330, %v701, %v702
  %v704 = vsel %vm330, %v700, %v701
  %v705 = vsel %vm330, %v702, %v700
  %v706 = vmax.f32 %v694, %v705
  %v707 = vmax.f32 %v695, %v704
  %v708 = vmax.f32 %v696, %v703
  %v709 = vrot.slane %v706, 2
  %v710 = vrot.slane %v707, 2
  %v711 = vrot.slane %v708, 2
  %v712 = vsel %vm340, %v710, %v711
  %v713 = vsel %vm340, %v709, %v710
  %v714 = vmax.f32 %v706, %v713
  %v715 = vmax.f32 %v707, %v712
  %v716 = vrot.slane %v694, 6
  %v717 = vrot.slane %v695, 6
  %v718 = vrot.slane %v696, 6
  %v719 = vsel %vm348, %v716, %v717
  %v720 = vsel %vm348, %v718, %v716
  %v721 = vmax.f32 %v714, %v720
  %v722 = vmax.f32 %v715, %v719
  %723 = vst [vmem:[#allocation2] sm:$0xff] %v721
  %724 = vst [vmem:[#allocation2 + $0x10] sm:$0xff] %v722
  %v725 = vrot.slane %v697, 7
  %v726 = vrot.slane %v698, 7
  %v727 = vrot.slane %v699, 7
  %v728 = vsel %vm330, %v726, %v727
  %v729 = vsel %vm330, %v725, %v726
  %v730 = vsel %vm330, %v727, %v725
  %v731 = vmax.f32 %v697, %v730
  %v732 = vmax.f32 %v698, %v729
  %v733 = vmax.f32 %v699, %v728
  %v734 = vrot.slane %v731, 2
  %v735 = vrot.slane %v732, 2
  %v736 = vrot.slane %v733, 2
  %v737 = vsel %vm340, %v735, %v736
  %v738 = vsel %vm340, %v734, %v735
  %v739 = vmax.f32 %v731, %v738
  %v740 = vmax.f32 %v732, %v737
  %v741 = vrot.slane %v697, 6
  %v742 = vrot.slane %v698, 6
  %v743 = vrot.slane %v699, 6
  %v744 = vsel %vm348, %v741, %v742
  %v745 = vsel %vm348, %v743, %v741
  %v746 = vmax.f32 %v739, %v745
  %v747 = vmax.f32 %v740, %v744
  %748 = vst [vmem:[%s378] sm:$0xff] %v746
  %749 = vst [vmem:[%s378 + $0x10] sm:$0xff] %v747
  %s750 = scalar_lea.vmem %s3, 256
  %v751 = vld [vmem:[%s750] sm:$0xff]
  %v752 = vld [vmem:[%s750 + $0x8] sm:$0xff]
  %v753 = vld [vmem:[%s750 + $0x10] sm:$0xff]
  %v754 = vld [vmem:[%s750 + $0x18] sm:$0xff]
  %v755 = vld [vmem:[%s750 + $0x20] sm:$0xff]
  %v756 = vld [vmem:[%s750 + $0x28] sm:$0xff]
  %v757 = vld [vmem:[%s750 + $0x30] sm:$0xff]
  %v758 = vld [vmem:[%s750 + $0x38] sm:$0xff]
  %v759 = vld [vmem:[%s750 + $0x40] sm:$0xff]
  %v760 = vld [vmem:[%s750 + $0x48] sm:$0xff]
  %v761 = vld [vmem:[%s750 + $0x50] sm:$0xff]
  %v762 = vld [vmem:[%s750 + $0x58] sm:$0xff]
  %v763 = vld [vmem:[%s750 + $0x60] sm:$0xff]
  %v764 = vld [vmem:[%s750 + $0x68] sm:$0xff]
  %v765 = vld [vmem:[%s750 + $0x70] sm:$0xff]
  %v766 = vld [vmem:[%s750 + $0x78] sm:$0xff]
  %767 = vmatprep.subr.mxu0 0.0
  %768 = vmatpush1.msra.mxu0 %v766
  %769 = vmatprep.subr.mxu0 0.0
  %770 = vmatpush1.msra.mxu0 %v765
  %771 = vmatprep.subr.mxu0 0.0
  %772 = vmatpush1.msra.mxu0 %v764
  %773 = vmatprep.subr.mxu0 0.0
  %774 = vmatpush1.msra.mxu0 %v763
  %775 = vmatprep.subr.mxu0 0.0
  %776 = vmatpush1.msra.mxu0 %v762
  %777 = vmatprep.subr.mxu0 0.0
  %778 = vmatpush1.msra.mxu0 %v761
  %779 = vmatprep.subr.mxu0 0.0
  %780 = vmatpush1.msra.mxu0 %v760
  %781 = vmatprep.subr.mxu0 0.0
  %782 = vmatpush1.msra.mxu0 %v759
  %783 = vmatprep.subr.mxu0 0.0
  %784 = vmatpush1.msra.mxu0 %v758
  %785 = vmatprep.subr.mxu0 0.0
  %786 = vmatpush1.msra.mxu0 %v757
  %787 = vmatprep.subr.mxu0 0.0
  %788 = vmatpush1.msra.mxu0 %v756
  %789 = vmatprep.subr.mxu0 0.0
  %790 = vmatpush1.msra.mxu0 %v755
  %791 = vmatprep.subr.mxu0 0.0
  %792 = vmatpush1.msra.mxu0 %v754
  %793 = vmatprep.subr.mxu0 0.0
  %794 = vmatpush1.msra.mxu0 %v753
  %795 = vmatprep.subr.mxu0 0.0
  %796 = vmatpush1.msra.mxu0 %v752
  %797 = vmatprep.subr.mxu0 0.0
  %798 = vmatpush1.msra.mxu0 %v751
  %799 = vmatprep.subr.mxu0 0.0
  %800 = vmatpush2.msra.mxu0 0.0
  %801 = vmatprep.subr.mxu0 0.0
  %802 = vmatpush2.msra.mxu0 0.0
  %803 = vmatprep.subr.mxu0 0.0
  %804 = vmatpush2.msra.mxu0 0.0
  %805 = vmatprep.subr.mxu0 0.0
  %806 = vmatpush2.msra.mxu0 0.0
  %807 = vmatprep.subr.mxu0 0.0
  %808 = vmatpush2.msra.mxu0 0.0
  %809 = vmatprep.subr.mxu0 0.0
  %810 = vmatpush2.msra.mxu0 0.0
  %811 = vmatprep.subr.mxu0 0.0
  %812 = vmatpush2.msra.mxu0 0.0
  %813 = vmatprep.subr.mxu0 0.0
  %814 = vmatpush2.msra.mxu0 0.0
  %815 = vmatprep.subr.mxu0 0.0
  %816 = vmatpush2.msra.mxu0 0.0
  %817 = vmatprep.subr.mxu0 0.0
  %818 = vmatpush2.msra.mxu0 0.0
  %819 = vmatprep.subr.mxu0 0.0
  %820 = vmatpush2.msra.mxu0 0.0
  %821 = vmatprep.subr.mxu0 0.0
  %822 = vmatpush2.msra.mxu0 0.0
  %823 = vmatprep.subr.mxu0 0.0
  %824 = vmatpush2.msra.mxu0 0.0
  %825 = vmatprep.subr.mxu0 0.0
  %826 = vmatpush2.msra.mxu0 0.0
  %827 = vmatprep.subr.mxu0 0.0
  %828 = vmatpush2.msra.mxu0 0.0
  %829 = vmatprep.subr.mxu0 0.0
  %830 = vmatpush2.msra.mxu0 0.0
  %831 = vmatprep.mubr.f32.mxu0 0.0
  %832 = vmatmul.mubr.f32.gmra.mxu0 %v721
  %v833 = vpop.f32.mrf.mxu0
  %v834 = vadd.f32 0.0, %v833
  %v835 = vpop.f32.mrf.mxu0
  %836 = vmatprep.mubr.f32.mxu0 0.0
  %837 = vmatmul.mubr.f32.gmra.mxu0 %v722
  %v838 = vpop.f32.mrf.mxu0
  %v839 = vadd.f32 0.0, %v838
  %v840 = vpop.f32.mrf.mxu0
  %841 = vmatprep.mubr.f32.mxu0 0.0
  %842 = vmatmul.mubr.f32.gmra.mxu0 %v746
  %v843 = vpop.f32.mrf.mxu0
  %v844 = vadd.f32 0.0, %v843
  %v845 = vpop.f32.mrf.mxu0
  %846 = vmatprep.mubr.f32.mxu0 0.0
  %847 = vmatmul.mubr.f32.gmra.mxu0 %v747
  %v848 = vpop.f32.mrf.mxu0
  %v849 = vadd.f32 0.0, %v848
  %v850 = vpop.f32.mrf.mxu0
  %851 = vdwg.mxu0
  %v852 = vadd.f32 %v550, %v834
  %v853 = vadd.f32 %v555, %v839
  %v854 = vadd.f32 %v560, %v844
  %v855 = vadd.f32 %v565, %v849
  %v856 = vld [vmem:[#allocation2] sm:$0xff]
  %v857 = vld [vmem:[#allocation2 + $0x8] sm:$0xff]
  %v858 = vld [vmem:[#allocation2 + $0x10] sm:$0xff]
  %v859 = vld [vmem:[#allocation2 + $0x18] sm:$0xff]
  %v860 = vld [vmem:[#allocation2 + $0x20] sm:$0xff]
  %v861 = vld [vmem:[#allocation2 + $0x28] sm:$0xff]
  %v862 = vld [vmem:[#allocation2 + $0x30] sm:$0xff]
  %v863 = vld [vmem:[#allocation2 + $0x38] sm:$0xff]
  %v864 = vld [vmem:[#allocation2 + $0x40] sm:$0xff]
  %v865 = vld [vmem:[#allocation2 + $0x48] sm:$0xff]
  %v866 = vld [vmem:[#allocation2 + $0x50] sm:$0xff]
  %v867 = vld [vmem:[#allocation2 + $0x58] sm:$0xff]
  %868 = vrot.lane.b32.xlu0 %v856, 8
  %v869 = vpop.permute.xlu0 %868
  %870 = vrot.lane.b32.xlu0 %v858, 8
  %v871 = vpop.permute.xlu0 %870
  %872 = vrot.lane.b32.xlu0 %v860, 8
  %v873 = vpop.permute.xlu0 %872
  %874 = vrot.lane.b32.xlu0 %v862, 8
  %v875 = vpop.permute.xlu0 %874
  %876 = vrot.lane.b32.xlu0 %v864, 8
  %v877 = vpop.permute.xlu0 %876
  %878 = vrot.lane.b32.xlu0 %v866, 8
  %v879 = vpop.permute.xlu0 %878
  %880 = vrot.lane.b32.xlu0 %v857, 8
  %v881 = vpop.permute.xlu0 %880
  %882 = vrot.lane.b32.xlu0 %v859, 8
  %v883 = vpop.permute.xlu0 %882
  %884 = vrot.lane.b32.xlu0 %v861, 8
  %v885 = vpop.permute.xlu0 %884
  %886 = vrot.lane.b32.xlu0 %v863, 8
  %v887 = vpop.permute.xlu0 %886
  %888 = vrot.lane.b32.xlu0 %v865, 8
  %v889 = vpop.permute.xlu0 %888
  %890 = vrot.lane.b32.xlu0 %v867, 8
  %v891 = vpop.permute.xlu0 %890
  %v892 = vsel %vm226, %v869, %v881
  %v893 = vsel %vm226, %v871, %v883
  %v894 = vsel %vm226, %v873, %v885
  %v895 = vsel %vm226, %v875, %v887
  %v896 = vsel %vm226, %v877, %v889
  %v897 = vsel %vm226, %v879, %v891
  %v898 = vsel %vm226, %v881, %v869
  %v899 = vsel %vm226, %v883, %v871
  %v900 = vsel %vm226, %v885, %v873
  %v901 = vsel %vm226, %v887, %v875
  %v902 = vsel %vm226, %v889, %v877
  %v903 = vsel %vm226, %v891, %v879
  %v904 = vmax.f32 %v856, %v898
  %v905 = vmax.f32 %v857, %v892
  %v906 = vmax.f32 %v858, %v899
  %v907 = vmax.f32 %v859, %v893
  %v908 = vmax.f32 %v860, %v900
  %v909 = vmax.f32 %v861, %v894
  %v910 = vmax.f32 %v862, %v901
  %v911 = vmax.f32 %v863, %v895
  %v912 = vmax.f32 %v864, %v902
  %v913 = vmax.f32 %v865, %v896
  %v914 = vmax.f32 %v866, %v903
  %v915 = vmax.f32 %v867, %v897
  %916 = vrot.lane.b32.xlu0 %v904, 112
  %v917 = vpop.permute.xlu0 %916
  %918 = vrot.lane.b32.xlu0 %v906, 112
  %v919 = vpop.permute.xlu0 %918
  %920 = vrot.lane.b32.xlu0 %v908, 112
  %v921 = vpop.permute.xlu0 %920
  %922 = vrot.lane.b32.xlu0 %v910, 112
  %v923 = vpop.permute.xlu0 %922
  %924 = vrot.lane.b32.xlu0 %v912, 112
  %v925 = vpop.permute.xlu0 %924
  %926 = vrot.lane.b32.xlu0 %v914, 112
  %v927 = vpop.permute.xlu0 %926
  %928 = vrot.lane.b32.xlu0 %v905, 112
  %v929 = vpop.permute.xlu0 %928
  %930 = vrot.lane.b32.xlu0 %v907, 112
  %v931 = vpop.permute.xlu0 %930
  %932 = vrot.lane.b32.xlu0 %v909, 112
  %v933 = vpop.permute.xlu0 %932
  %934 = vrot.lane.b32.xlu0 %v911, 112
  %v935 = vpop.permute.xlu0 %934
  %936 = vrot.lane.b32.xlu0 %v913, 112
  %v937 = vpop.permute.xlu0 %936
  %938 = vrot.lane.b32.xlu0 %v915, 112
  %v939 = vpop.permute.xlu0 %938
  %v940 = vsel %vm275, %v917, %v929
  %v941 = vsel %vm275, %v919, %v931
  %v942 = vsel %vm275, %v921, %v933
  %v943 = vsel %vm275, %v923, %v935
  %v944 = vsel %vm275, %v925, %v937
  %v945 = vsel %vm275, %v927, %v939
  %v946 = vmax.f32 %v904, %v940
  %v947 = vmax.f32 %v906, %v941
  %v948 = vmax.f32 %v908, %v942
  %v949 = vmax.f32 %v910, %v943
  %v950 = vmax.f32 %v912, %v944
  %v951 = vmax.f32 %v914, %v945
  %952 = vrot.lane.b32.xlu0 %v856, 16
  %v953 = vpop.permute.xlu0 %952
  %954 = vrot.lane.b32.xlu0 %v858, 16
  %v955 = vpop.permute.xlu0 %954
  %956 = vrot.lane.b32.xlu0 %v860, 16
  %v957 = vpop.permute.xlu0 %956
  %958 = vrot.lane.b32.xlu0 %v862, 16
  %v959 = vpop.permute.xlu0 %958
  %960 = vrot.lane.b32.xlu0 %v864, 16
  %v961 = vpop.permute.xlu0 %960
  %962 = vrot.lane.b32.xlu0 %v866, 16
  %v963 = vpop.permute.xlu0 %962
  %964 = vrot.lane.b32.xlu0 %v857, 16
  %v965 = vpop.permute.xlu0 %964
  %966 = vrot.lane.b32.xlu0 %v859, 16
  %v967 = vpop.permute.xlu0 %966
  %968 = vrot.lane.b32.xlu0 %v861, 16
  %v969 = vpop.permute.xlu0 %968
  %970 = vrot.lane.b32.xlu0 %v863, 16
  %v971 = vpop.permute.xlu0 %970
  %972 = vrot.lane.b32.xlu0 %v865, 16
  %v973 = vpop.permute.xlu0 %972
  %974 = vrot.lane.b32.xlu0 %v867, 16
  %v975 = vpop.permute.xlu0 %974
  %v976 = vsel %vm312, %v965, %v953
  %v977 = vsel %vm312, %v967, %v955
  %v978 = vsel %vm312, %v969, %v957
  %v979 = vsel %vm312, %v971, %v959
  %v980 = vsel %vm312, %v973, %v961
  %v981 = vsel %vm312, %v975, %v963
  %v982 = vmax.f32 %v946, %v976
  %v983 = vmax.f32 %v947, %v977
  %v984 = vmax.f32 %v948, %v978
  %v985 = vmax.f32 %v949, %v979
  %v986 = vmax.f32 %v950, %v980
  %v987 = vmax.f32 %v951, %v981
  %v988 = vrot.slane %v982, 7
  %v989 = vrot.slane %v983, 7
  %v990 = vrot.slane %v984, 7
  %v991 = vsel %vm330, %v989, %v990
  %v992 = vsel %vm330, %v988, %v989
  %v993 = vsel %vm330, %v990, %v988
  %v994 = vmax.f32 %v982, %v993
  %v995 = vmax.f32 %v983, %v992
  %v996 = vmax.f32 %v984, %v991
  %v997 = vrot.slane %v994, 2
  %v998 = vrot.slane %v995, 2
  %v999 = vrot.slane %v996, 2
  %v1000 = vsel %vm340, %v998, %v999
  %v1001 = vsel %vm340, %v997, %v998
  %v1002 = vmax.f32 %v994, %v1001
  %v1003 = vmax.f32 %v995, %v1000
  %v1004 = vrot.slane %v982, 6
  %v1005 = vrot.slane %v983, 6
  %v1006 = vrot.slane %v984, 6
  %v1007 = vsel %vm348, %v1004, %v1005
  %v1008 = vsel %vm348, %v1006, %v1004
  %v1009 = vmax.f32 %v1002, %v1008
  %v1010 = vmax.f32 %v1003, %v1007
  %v1011 = vrot.slane %v985, 7
  %v1012 = vrot.slane %v986, 7
  %v1013 = vrot.slane %v987, 7
  %v1014 = vsel %vm330, %v1012, %v1013
  %v1015 = vsel %vm330, %v1011, %v1012
  %v1016 = vsel %vm330, %v1013, %v1011
  %v1017 = vmax.f32 %v985, %v1016
  %v1018 = vmax.f32 %v986, %v1015
  %v1019 = vmax.f32 %v987, %v1014
  %v1020 = vrot.slane %v1017, 2
  %v1021 = vrot.slane %v1018, 2
  %v1022 = vrot.slane %v1019, 2
  %v1023 = vsel %vm340, %v1021, %v1022
  %v1024 = vsel %vm340, %v1020, %v1021
  %v1025 = vmax.f32 %v1017, %v1024
  %v1026 = vmax.f32 %v1018, %v1023
  %v1027 = vrot.slane %v985, 6
  %v1028 = vrot.slane %v986, 6
  %v1029 = vrot.slane %v987, 6
  %v1030 = vsel %vm348, %v1027, %v1028
  %v1031 = vsel %vm348, %v1029, %v1027
  %v1032 = vmax.f32 %v1025, %v1031
  %v1033 = vmax.f32 %v1026, %v1030
  %s1034 = scalar_lea.vmem %s3, 384
  %v1035 = vld [vmem:[%s1034] sm:$0xff]
  %v1036 = vld [vmem:[%s1034 + $0x8] sm:$0xff]
  %v1037 = vld [vmem:[%s1034 + $0x10] sm:$0xff]
  %v1038 = vld [vmem:[%s1034 + $0x18] sm:$0xff]
  %v1039 = vld [vmem:[%s1034 + $0x20] sm:$0xff]
  %v1040 = vld [vmem:[%s1034 + $0x28] sm:$0xff]
  %v1041 = vld [vmem:[%s1034 + $0x30] sm:$0xff]
  %v1042 = vld [vmem:[%s1034 + $0x38] sm:$0xff]
  %v1043 = vld [vmem:[%s1034 + $0x40] sm:$0xff]
  %v1044 = vld [vmem:[%s1034 + $0x48] sm:$0xff]
  %v1045 = vld [vmem:[%s1034 + $0x50] sm:$0xff]
  %v1046 = vld [vmem:[%s1034 + $0x58] sm:$0xff]
  %v1047 = vld [vmem:[%s1034 + $0x60] sm:$0xff]
  %v1048 = vld [vmem:[%s1034 + $0x68] sm:$0xff]
  %v1049 = vld [vmem:[%s1034 + $0x70] sm:$0xff]
  %v1050 = vld [vmem:[%s1034 + $0x78] sm:$0xff]
  %1051 = vmatprep.subr.mxu0 0.0
  %1052 = vmatpush1.msra.mxu0 %v1050
  %1053 = vmatprep.subr.mxu0 0.0
  %1054 = vmatpush1.msra.mxu0 %v1049
  %1055 = vmatprep.subr.mxu0 0.0
  %1056 = vmatpush1.msra.mxu0 %v1048
  %1057 = vmatprep.subr.mxu0 0.0
  %1058 = vmatpush1.msra.mxu0 %v1047
  %1059 = vmatprep.subr.mxu0 0.0
  %1060 = vmatpush1.msra.mxu0 %v1046
  %1061 = vmatprep.subr.mxu0 0.0
  %1062 = vmatpush1.msra.mxu0 %v1045
  %1063 = vmatprep.subr.mxu0 0.0
  %1064 = vmatpush1.msra.mxu0 %v1044
  %1065 = vmatprep.subr.mxu0 0.0
  %1066 = vmatpush1.msra.mxu0 %v1043
  %1067 = vmatprep.subr.mxu0 0.0
  %1068 = vmatpush1.msra.mxu0 %v1042
  %1069 = vmatprep.subr.mxu0 0.0
  %1070 = vmatpush1.msra.mxu0 %v1041
  %1071 = vmatprep.subr.mxu0 0.0
  %1072 = vmatpush1.msra.mxu0 %v1040
  %1073 = vmatprep.subr.mxu0 0.0
  %1074 = vmatpush1.msra.mxu0 %v1039
  %1075 = vmatprep.subr.mxu0 0.0
  %1076 = vmatpush1.msra.mxu0 %v1038
  %1077 = vmatprep.subr.mxu0 0.0
  %1078 = vmatpush1.msra.mxu0 %v1037
  %1079 = vmatprep.subr.mxu0 0.0
  %1080 = vmatpush1.msra.mxu0 %v1036
  %1081 = vmatprep.subr.mxu0 0.0
  %1082 = vmatpush1.msra.mxu0 %v1035
  %1083 = vmatprep.subr.mxu0 0.0
  %1084 = vmatpush2.msra.mxu0 0.0
  %1085 = vmatprep.subr.mxu0 0.0
  %1086 = vmatpush2.msra.mxu0 0.0
  %1087 = vmatprep.subr.mxu0 0.0
  %1088 = vmatpush2.msra.mxu0 0.0
  %1089 = vmatprep.subr.mxu0 0.0
  %1090 = vmatpush2.msra.mxu0 0.0
  %1091 = vmatprep.subr.mxu0 0.0
  %1092 = vmatpush2.msra.mxu0 0.0
  %1093 = vmatprep.subr.mxu0 0.0
  %1094 = vmatpush2.msra.mxu0 0.0
  %1095 = vmatprep.subr.mxu0 0.0
  %1096 = vmatpush2.msra.mxu0 0.0
  %1097 = vmatprep.subr.mxu0 0.0
  %1098 = vmatpush2.msra.mxu0 0.0
  %1099 = vmatprep.subr.mxu0 0.0
  %1100 = vmatpush2.msra.mxu0 0.0
  %1101 = vmatprep.subr.mxu0 0.0
  %1102 = vmatpush2.msra.mxu0 0.0
  %1103 = vmatprep.subr.mxu0 0.0
  %1104 = vmatpush2.msra.mxu0 0.0
  %1105 = vmatprep.subr.mxu0 0.0
  %1106 = vmatpush2.msra.mxu0 0.0
  %1107 = vmatprep.subr.mxu0 0.0
  %1108 = vmatpush2.msra.mxu0 0.0
  %1109 = vmatprep.subr.mxu0 0.0
  %1110 = vmatpush2.msra.mxu0 0.0
  %1111 = vmatprep.subr.mxu0 0.0
  %1112 = vmatpush2.msra.mxu0 0.0
  %1113 = vmatprep.subr.mxu0 0.0
  %1114 = vmatpush2.msra.mxu0 0.0
  %1115 = vmatprep.mubr.f32.mxu0 0.0
  %1116 = vmatmul.mubr.f32.gmra.mxu0 %v1009
  %v1117 = vpop.f32.mrf.mxu0
  %v1118 = vadd.f32 0.0, %v1117
  %v1119 = vpop.f32.mrf.mxu0
  %1120 = vmatprep.mubr.f32.mxu0 0.0
  %1121 = vmatmul.mubr.f32.gmra.mxu0 %v1010
  %v1122 = vpop.f32.mrf.mxu0
  %v1123 = vadd.f32 0.0, %v1122
  %v1124 = vpop.f32.mrf.mxu0
  %1125 = vmatprep.mubr.f32.mxu0 0.0
  %1126 = vmatmul.mubr.f32.gmra.mxu0 %v1032
  %v1127 = vpop.f32.mrf.mxu0
  %v1128 = vadd.f32 0.0, %v1127
  %v1129 = vpop.f32.mrf.mxu0
  %1130 = vmatprep.mubr.f32.mxu0 0.0
  %1131 = vmatmul.mubr.f32.gmra.mxu0 %v1033
  %v1132 = vpop.f32.mrf.mxu0
  %v1133 = vadd.f32 0.0, %v1132
  %v1134 = vpop.f32.mrf.mxu0
  %1135 = vdwg.mxu0
  %v1136 = vadd.f32 %v852, %v1118
  %v1137 = vadd.f32 %v853, %v1123
  %v1138 = vadd.f32 %v854, %v1128
  %v1139 = vadd.f32 %v855, %v1133
  %v1140 = vld [vmem:[%s4] sm:$0x1]
  %v1142 = vlaneseq
  %v1143 = vshrl.u32 %v1142, 7
  %v1144 = vsub.s32 0, %v1143
  %v1145 = vrot.slane %v1140, %v1144
  %v1147 = vadd.f32 %v1136, %v1145
  %v1148 = vadd.f32 %v1137, %v1145
  %v1149 = vadd.f32 %v1138, %v1145
  %v1150 = vadd.f32 %v1139, %v1145
  %v1151 = vxor.u32 %v1147, 2147483648
  %v1152 = vxor.u32 %v1148, 2147483648
  %v1153 = vxor.u32 %v1149, 2147483648
  %v1154 = vxor.u32 %v1150, 2147483648
  %v1155 = vmul.f32 %v1151, 1.442695
  %v1156 = vpow.pop %v1155
  %v1157 = vmul.f32 %v1152, 1.442695
  %v1158 = vpow.pop %v1157
  %v1159 = vmul.f32 %v1153, 1.442695
  %v1160 = vpow.pop %v1159
  %v1161 = vmul.f32 %v1154, 1.442695
  %v1162 = vpow.pop %v1161
  %v1163 = vadd.f32 %v1156, 1.0
  %v1164 = vadd.f32 %v1158, 1.0
  %v1165 = vadd.f32 %v1160, 1.0
  %v1166 = vadd.f32 %v1162, 1.0
  %v1167 = vrcp.pop %v1163
  %v1168 = vmul.f32 1.0, %v1167
  %v1169 = vrcp.pop %v1164
  %v1170 = vmul.f32 1.0, %v1169
  %v1171 = vrcp.pop %v1165
  %v1172 = vmul.f32 1.0, %v1171
  %v1173 = vrcp.pop %v1166
  %v1174 = vmul.f32 1.0, %v1173
  %v1175 = vmul.f32 %v1147, %v1168
  %v1176 = vmul.f32 %v1148, %v1170
  %v1177 = vmul.f32 %v1149, %v1172
  %v1178 = vmul.f32 %v1150, %v1174
  %1179 = vst [vmem:[%s5] sm:$0xff] %v1175
  %1180 = vst [vmem:[%s5 + $0x8] sm:$0xff] %v1176
  %1181 = vst [vmem:[%s5 + $0x10] sm:$0xff] %v1177
  %1182 = vst [vmem:[%s5 + $0x18] sm:$0xff] %v1178
  // Predicated region
  $region22: #{spp_pruned.1} parent=0 // pred_check
    _
  $region23: #{spp_pruned.1} parent=0 // pred_check_branch
    %1184 = sbr.rel (0) target = $region25
  $region24: #{spp_pruned.1} parent=0 // pred_region
    _
  $region25: #{spp_pruned.1} parent=0 // pred_fallthru
    _
  // Predicated region
  $region26: #{spp_pruned.1} parent=0 // pred_check
    _
  $region27: #{spp_pruned.1} parent=0 // pred_check_branch
    %1186 = sbr.rel (0) target = $region29
  $region28: #{spp_pruned.1} parent=0 // pred_region
    _
  $region29: #{spp_pruned.1} parent=0 // pred_fallthru
    _

</llo_original>
